<compile_context>
chip_gen: v5e
topology: v5e:2x2
jax: 0.10.0
libtpu: 0.0.40
codegen_flags: <defaults>
</compile_context>

<pallas_src>
import functools

import jax
import jax.numpy as jnp
from jax import lax
from jax.experimental import pallas as pl
from jax.experimental.pallas import tpu as pltpu


def _sigmoid(x):
    # exact identity sigmoid(x) = 0.5*(tanh(x/2)+1): single EUP op, stays f32.
    return 0.5 * (jnp.tanh(0.5 * x) + 1.0)


def _bilstm_attention_kernel(
        x2_ref,                      # (1, 2S, 2*Din+2) interleaved fwd/bwd rows (+bias cols)
        wbig_ref,                    # (2*Din+2, 4H)  [Wihf^T ; Wihb^T ; bf ; bb]
        whh_ref,                     # (H, 8H)        [Whhf^T | Whhb^T]
        wfc_ref, bfc_ref,            # (2H, E), (1, E)
        wqkv_ref, bqkv_ref,          # (E, 3E), (1, 3E)  (1/sqrt(dh) folded into Q slice)
        wout_ref, bout_ref,          # (E, E), (1, E)
        hmask_ref,                   # (NH*S, E) block mask for batched-head scores
        omask_ref,                   # (NH, E)   head -> output-column mask
        attn_out_ref,                # (1, 1, E)
        attn_w_ref,                  # (1, S, S)
        *, seq_len, hidden_dim, embed_dim, num_heads):
    S, H, E, NH = seq_len, hidden_dim, embed_dim, num_heads

    # ---------------- BiLSTM ----------------
    # Hoisted input projection (biases folded): one matmul produces, for every
    # loop step t:
    #   row 2t   = x[t]     @ Wihf^T + (b_ih_f + b_hh_f)   (forward,  time t)
    #   row 2t+1 = x[S-1-t] @ Wihb^T + (b_ih_b + b_hh_b)   (backward, time S-1-t)
    x2 = x2_ref[0]                                                    # (2S, 2*Din+2)
    xw = jnp.dot(x2, wbig_ref[...], preferred_element_type=jnp.float32)  # (2S, 4H)

    whh = whh_ref[...]                                                # (H, 8H)
    # fused state: row 0 = forward direction, row 1 = backward direction
    row_is_fwd = lax.broadcasted_iota(jnp.int32, (2, 4 * H), 0) == 0

    h = jnp.zeros((2, H), jnp.float32)
    c = jnp.zeros((2, H), jnp.float32)
    h_steps = []
    # Fully unrolled (small S): hidden states stay register resident, so there
    # are no per-step masked VMEM stores on the serial critical path.
    for t in range(S):
        # ONE MXU push for both directions; result (2, 8H).
        r = jnp.dot(h, whh, preferred_element_type=jnp.float32)
        # diagonal block: row 0 <- cols [0,4H) (fwd), row 1 <- cols [4H,8H) (bwd)
        gates = (jnp.where(row_is_fwd, r[:, :4 * H], r[:, 4 * H:])
                 + xw[2 * t:2 * t + 2, :])                            # (2, 4H)
        # 3 EUP pushes / step instead of 5 per direction.
        sig = _sigmoid(gates)
        tah = jnp.tanh(gates)
        i_g = sig[:, 0:H]
        f_g = sig[:, H:2 * H]
        g_g = tah[:, 2 * H:3 * H]
        o_g = sig[:, 3 * H:4 * H]
        c = f_g * c + i_g * g_g
        h = o_g * jnp.tanh(c)
        h_steps.append(h)

    # re-assemble (S, 2H) = [h_fwd(s) | h_bwd(s)] in sequence order
    hf = jnp.concatenate([h_steps[s][0:1, :] for s in range(S)], axis=0)        # (S, H)
    hb = jnp.concatenate([h_steps[S - 1 - s][1:2, :] for s in range(S)], axis=0)
    hcat = jnp.concatenate([hf, hb], axis=1)                                    # (S, 2H)

    # ---------------- fc projection ----------------
    proj = (jnp.dot(hcat, wfc_ref[...], preferred_element_type=jnp.float32)
            + bfc_ref[...])                                                     # (S, E)

    # -------- multi-head self-attention (heads batched along sublanes) ------
    qkv = (jnp.dot(proj, wqkv_ref[...], preferred_element_type=jnp.float32)
           + bqkv_ref[...])                                                     # (S, 3E)
    q = qkv[:, 0:E]
    k = qkv[:, E:2 * E]
    v = qkv[:, 2 * E:3 * E]

    # Block-masked Q stacked over heads -> all heads' scores in ONE NT matmul:
    # scores[h*S + i, j] = q_h[i] . k_h[j]   (Q scale already folded in).
    q_bd = jnp.concatenate([q] * NH, axis=0) * hmask_ref[...]                   # (NH*S, E)
    scores = lax.dot_general(q_bd, k, (((1,), (1,)), ((), ())),
                             preferred_element_type=jnp.float32)                # (NH*S, S)

    # ONE softmax / reciprocal chain over the stacked block (not per head).
    scores = scores - jnp.max(scores, axis=-1, keepdims=True)
    e = jnp.exp(scores)
    denom = jnp.sum(e, axis=-1, keepdims=True)
    inv = pl.reciprocal(denom, approx=True)                 # EUP slot
    inv = inv * (2.0 - denom * inv)                         # 1 Newton step -> ~f32
    probs = e * inv                                         # (NH*S, S)

    # head-averaged attention weights (returned); 8-sublane-aligned slices
    w_sum = probs[0:S, :]
    for hd in range(1, NH):
        w_sum = w_sum + probs[hd * S:(hd + 1) * S, :]
    attn_w_ref[0] = w_sum * (1.0 / NH)

    # attn_out only uses the last query row -> last-row context only.
    p_last = jnp.concatenate(
        [probs[hd * S + S - 1:hd * S + S, :] for hd in range(NH)], axis=0)      # (NH, S)
    m = jnp.dot(p_last, v, preferred_element_type=jnp.float32)                  # (NH, E)
    ctx_last = jnp.sum(m * omask_ref[...], axis=0, keepdims=True)               # (1, E)
    attn_out_ref[0] = (jnp.dot(ctx_last, wout_ref[...],
                               preferred_element_type=jnp.float32)
                       + bout_ref[...])


# --------------------------- host-side preparation --------------------------
def _prepare_weights(params, *, seq_len, hidden_dim, embed_dim, num_heads):
    S, H, E, NH = seq_len, hidden_dim, embed_dim, num_heads
    dh = E // NH
    scale = 1.0 / (dh ** 0.5)
    f32 = jnp.float32

    # LSTM input projection, both directions + fused biases, as ONE matrix.
    wihf_t = params["w_ih_f"].T.astype(f32)                       # (Din, 4H)
    wihb_t = params["w_ih_b"].T.astype(f32)
    bf = (params["b_ih_f"] + params["b_hh_f"]).astype(f32)        # (4H,)
    bb = (params["b_ih_b"] + params["b_hh_b"]).astype(f32)
    w_big = jnp.concatenate([wihf_t, wihb_t, bf[None, :], bb[None, :]],
                            axis=0)                               # (2Din+2, 4H)

    # Recurrent weights concatenated so one (2,H)x(H,8H) push serves both dirs.
    whh_cat = jnp.concatenate([params["w_hh_f"].T, params["w_hh_b"].T],
                              axis=1)                             # (H, 8H)

    wfc_t = params["w_fc"].T                                      # (2H, E)
    bfc = params["b_fc"].reshape(1, E)

    # packed QKV with 1/sqrt(head_dim) folded into the Q slice
    w_in = params["w_in_proj"]                                    # (3E, E)
    b_in = params["b_in_proj"]                                    # (3E,)
    wqkv_t = jnp.concatenate([w_in[:E] * scale, w_in[E:]], axis=0).T   # (E, 3E)
    bqkv = jnp.concatenate([b_in[:E] * scale, b_in[E:]], axis=0).reshape(1, 3 * E)

    wout_t = params["w_out_proj"].T                               # (E, E)
    bout = params["b_out_proj"].reshape(1, E)

    # constant head masks for the batched-heads attention
    col_head = jnp.arange(E) // dh
    hmask = (jnp.repeat(jnp.arange(NH), S)[:, None]
             == col_head[None, :]).astype(f32)                    # (NH*S, E)
    omask = (jnp.arange(NH)[:, None] == col_head[None, :]).astype(f32)  # (NH, E)

    return (w_big, whh_cat, wfc_t, bfc, wqkv_t, bqkv, wout_t, bout, hmask, omask)


def _build_x2(xb):
    """(B, S, Din) -> (B, 2S, 2Din+2) interleaved fwd/bwd rows with bias cols."""
    B, S, Din = xb.shape
    z = jnp.zeros_like(xb)
    ones = jnp.ones((B, S, 1), xb.dtype)
    zer1 = jnp.zeros((B, S, 1), xb.dtype)
    fwd = jnp.concatenate([xb, z, ones, zer1], axis=-1)               # (B, S, 2Din+2)
    bwd = jnp.concatenate([z, xb[:, ::-1, :], zer1, ones], axis=-1)   # time-reversed
    return jnp.stack([fwd, bwd], axis=2).reshape(B, 2 * S, 2 * Din + 2)


def bilstm_with_attention_batched(xb, params, *, hidden_dim, embed_dim,
                                  num_heads):
    """xb: (B, S, input_dim) f32. Returns (attn_out (B,E), attn_w (B,S,S))."""
    B, S, _ = xb.shape
    H, E, NH = hidden_dim, embed_dim, num_heads
    assert E % NH == 0

    weights = _prepare_weights(params, seq_len=S, hidden_dim=H, embed_dim=E,
                               num_heads=NH)
    x2 = _build_x2(xb.astype(jnp.float32))
    C = x2.shape[-1]

    kernel = functools.partial(_bilstm_attention_kernel, seq_len=S,
                               hidden_dim=H, embed_dim=E, num_heads=NH)

    # Weights: constant block index across the batch grid -> fetched once,
    # stay VMEM resident. x / outputs: one block per sequence.
    def _weight_spec(arr):
        return pl.BlockSpec(arr.shape, lambda b: (0, 0))

    in_specs = [pl.BlockSpec((1, 2 * S, C), lambda b: (b, 0, 0))]
    in_specs += [_weight_spec(w) for w in weights]

    # VMEM footprint per grid step is tiny at these sizes; for large S/H/E,
    # tile the attention over query blocks and/or raise vmem_limit_bytes
    # (v7x has only 64 MiB of VMEM).
    attn_out, attn_w = pl.pallas_call(
        kernel,
        out_shape=(jax.ShapeDtypeStruct((B, 1, E), jnp.float32),
                   jax.ShapeDtypeStruct((B, S, S), jnp.float32)),
        grid=(B,),
        in_specs=in_specs,
        out_specs=(pl.BlockSpec((1, 1, E), lambda b: (b, 0, 0)),
                   pl.BlockSpec((1, S, S), lambda b: (b, 0, 0))),
        compiler_params=pltpu.CompilerParams(
            dimension_semantics=("parallel",)),   # shards batch over v7x's 2 TCs
    )(x2, *weights)

    return attn_out.reshape(B, E), attn_w


def bilstm_with_attention(x, params, *, hidden_dim, embed_dim, num_heads):
    """Single-sequence forward, matching the PyTorch module's interface.

    x: (S, input_dim) f32. Returns (attn_out (1, E), attn_weights (1, S, S)).
    """
    attn_out, attn_w = bilstm_with_attention_batched(
        x[None], params, hidden_dim=hidden_dim, embed_dim=embed_dim,
        num_heads=num_heads)
    return attn_out, attn_w


# ----------------------------- reference (pure JAX) -------------------------
def _reference(x, params, *, hidden_dim, embed_dim, num_heads):
    H, E = hidden_dim, embed_dim
    S = x.shape[0]
    dh = E // num_heads

    def lstm_dir(xs, w_ih, w_hh, b_ih, b_hh):
        h = jnp.zeros((H,), jnp.float32)
        c = jnp.zeros((H,), jnp.float32)
        outs = []
        for t in range(xs.shape[0]):
            g = w_ih @ xs[t] + b_ih + w_hh @ h + b_hh
            i = jax.nn.sigmoid(g[0:H])
            f = jax.nn.sigmoid(g[H:2 * H])
            gg = jnp.tanh(g[2 * H:3 * H])
            o = jax.nn.sigmoid(g[3 * H:4 * H])
            c = f * c + i * gg
            h = o * jnp.tanh(c)
            outs.append(h)
        return jnp.stack(outs)

    out_f = lstm_dir(x, params["w_ih_f"], params["w_hh_f"],
                     params["b_ih_f"], params["b_hh_f"])
    out_b = lstm_dir(x[::-1], params["w_ih_b"], params["w_hh_b"],
                     params["b_ih_b"], params["b_hh_b"])[::-1]
    lstm_out = jnp.concatenate([out_f, out_b], axis=-1)        # (S, 2H)

    proj = lstm_out @ params["w_fc"].T + params["b_fc"]        # (S, E)

    qkv = proj @ params["w_in_proj"].T + params["b_in_proj"]   # (S, 3E)
    q, k, v = qkv[:, :E], qkv[:, E:2 * E], qkv[:, 2 * E:]
    q = q * (1.0 / (dh ** 0.5))
    qh = q.reshape(S, num_heads, dh).transpose(1, 0, 2)
    kh = k.reshape(S, num_heads, dh).transpose(1, 0, 2)
    vh = v.reshape(S, num_heads, dh).transpose(1, 0, 2)
    scores = jnp.einsum("hqd,hkd->hqk", qh, kh)
    w = jax.nn.softmax(scores, axis=-1)
    ctx = jnp.einsum("hqk,hkd->hqd", w, vh)
    ctx = ctx.transpose(1, 0, 2).reshape(S, E)
    out = ctx @ params["w_out_proj"].T + params["b_out_proj"]
    return out[-1:, :], w.mean(axis=0).reshape(1, S, S)


def _uniform(key, shape, bound):
    return jax.random.uniform(key, shape, jnp.float32,
                              minval=-bound, maxval=bound)


def _init_params(key, input_dim, hidden_dim, embed_dim):
    H, E = hidden_dim, embed_dim
    ks = jax.random.split(key, 14)
    kb_lstm = 1.0 / (H ** 0.5)
    kb_fc = 1.0 / ((2 * H) ** 0.5)
    kb_attn = 1.0 / (E ** 0.5)
    return {
        "w_ih_f": _uniform(ks[0], (4 * H, input_dim), kb_lstm),
        "w_hh_f": _uniform(ks[1], (4 * H, H), kb_lstm),
        "b_ih_f": _uniform(ks[2], (4 * H,), kb_lstm),
        "b_hh_f": _uniform(ks[3], (4 * H,), kb_lstm),
        "w_ih_b": _uniform(ks[4], (4 * H, input_dim), kb_lstm),
        "w_hh_b": _uniform(ks[5], (4 * H, H), kb_lstm),
        "b_ih_b": _uniform(ks[6], (4 * H,), kb_lstm),
        "b_hh_b": _uniform(ks[7], (4 * H,), kb_lstm),
        "w_fc": _uniform(ks[8], (E, 2 * H), kb_fc),
        "b_fc": _uniform(ks[9], (E,), kb_fc),
        "w_in_proj": _uniform(ks[10], (3 * E, E), kb_attn),
        "b_in_proj": _uniform(ks[11], (3 * E,), kb_attn),
        "w_out_proj": _uniform(ks[12], (E, E), kb_attn),
        "b_out_proj": _uniform(ks[13], (E,), kb_attn),
    }


if __name__ == "__main__":
    S, input_dim, hidden_dim, embed_dim, num_heads = 8, 16, 32, 32, 4
    B = 4

    key = jax.random.PRNGKey(0)
    kx, kb, kp = jax.random.split(key, 3)
    x = jax.random.normal(kx, (S, input_dim), jnp.float32)
    params = _init_params(kp, input_dim, hidden_dim, embed_dim)

    # ---- single-sequence path (matches the PyTorch module's forward) ----
    attn_out, attn_w = bilstm_with_attention(
        x, params, hidden_dim=hidden_dim, embed_dim=embed_dim,
        num_heads=num_heads)
    jax.block_until_ready((attn_out, attn_w))

    ref_out, ref_w = _reference(x, params, hidden_dim=hidden_dim,
                                embed_dim=embed_dim, num_heads=num_heads)
    assert attn_out.shape == (1, embed_dim)
    assert attn_w.shape == (1, S, S)
    assert jnp.allclose(attn_out, ref_out, atol=1e-3, rtol=1e-3)
    assert jnp.allclose(attn_w, ref_w, atol=1e-3, rtol=1e-3)

    # ---- batched path (grid over sequences, "parallel" batch axis) ----
    xb = jax.random.normal(kb, (B, S, input_dim), jnp.float32)
    outs_b, ws_b = bilstm_with_attention_batched(
        xb, params, hidden_dim=hidden_dim, embed_dim=embed_dim,
        num_heads=num_heads)
    jax.block_until_ready((outs_b, ws_b))
    assert outs_b.shape == (B, embed_dim)
    assert ws_b.shape == (B, S, S)
    for i in range(B):
        ro, rw = _reference(xb[i], params, hidden_dim=hidden_dim,
                            embed_dim=embed_dim, num_heads=num_heads)
        assert jnp.allclose(outs_b[i:i + 1], ro, atol=1e-3, rtol=1e-3)
        assert jnp.allclose(ws_b[i][None], rw, atol=1e-3, rtol=1e-3)

    print("KERNEL_OK")
</pallas_src>

<mosaic_0001>
module attributes {stable_mosaic.version = 11 : i64} {
  func.func @_bilstm_attention_kernel(%arg0: i32, %arg1: memref<1x16x34xf32, #tpu.memory_space<vmem>>, %arg2: memref<34x128xf32, #tpu.memory_space<vmem>>, %arg3: memref<32x256xf32, #tpu.memory_space<vmem>>, %arg4: memref<64x32xf32, #tpu.memory_space<vmem>>, %arg5: memref<1x32xf32, #tpu.memory_space<vmem>>, %arg6: memref<32x96xf32, #tpu.memory_space<vmem>>, %arg7: memref<1x96xf32, #tpu.memory_space<vmem>>, %arg8: memref<32x32xf32, #tpu.memory_space<vmem>>, %arg9: memref<1x32xf32, #tpu.memory_space<vmem>>, %arg10: memref<32x32xf32, #tpu.memory_space<vmem>>, %arg11: memref<4x32xf32, #tpu.memory_space<vmem>>, %arg12: memref<1x1x32xf32, #tpu.memory_space<vmem>>, %arg13: memref<1x8x8xf32, #tpu.memory_space<vmem>>) attributes {dimension_semantics = [#tpu.dimension_semantics<parallel>], iteration_bounds = array<i64: 1>, scalar_prefetch = 0 : i64, scratch_operands = 0 : i64, tpu.core_type = #tpu.core_type<tc>, window_params = [{transform_indices = @transform_0, window_bounds = array<i64: 1, 16, 34>}, {pipeline_mode = #tpu.pipeline_mode<synchronous>, transform_indices = @transform_1, window_bounds = array<i64: 34, 128>}, {pipeline_mode = #tpu.pipeline_mode<synchronous>, transform_indices = @transform_2, window_bounds = array<i64: 32, 256>}, {pipeline_mode = #tpu.pipeline_mode<synchronous>, transform_indices = @transform_3, window_bounds = array<i64: 64, 32>}, {pipeline_mode = #tpu.pipeline_mode<synchronous>, transform_indices = @transform_4, window_bounds = array<i64: 1, 32>}, {pipeline_mode = #tpu.pipeline_mode<synchronous>, transform_indices = @transform_5, window_bounds = array<i64: 32, 96>}, {pipeline_mode = #tpu.pipeline_mode<synchronous>, transform_indices = @transform_6, window_bounds = array<i64: 1, 96>}, {pipeline_mode = #tpu.pipeline_mode<synchronous>, transform_indices = @transform_7, window_bounds = array<i64: 32, 32>}, {pipeline_mode = #tpu.pipeline_mode<synchronous>, transform_indices = @transform_8, window_bounds = array<i64: 1, 32>}, {pipeline_mode = #tpu.pipeline_mode<synchronous>, transform_indices = @transform_9, window_bounds = array<i64: 32, 32>}, {pipeline_mode = #tpu.pipeline_mode<synchronous>, transform_indices = @transform_10, window_bounds = array<i64: 4, 32>}, {transform_indices = @transform_11, window_bounds = array<i64: 1, 1, 32>}, {transform_indices = @transform_12, window_bounds = array<i64: 1, 8, 8>}]} {
    %c0 = arith.constant 0 : index
    %c0_0 = arith.constant 0 : index
    %c0_1 = arith.constant 0 : index
    %0 = vector.load %arg1[%c0, %c0_0, %c0_1] : memref<1x16x34xf32, #tpu.memory_space<vmem>>, vector<1x16x34xf32>
    %1 = vector.shape_cast %0 : vector<1x16x34xf32> to vector<16x34xf32>
    %c0_2 = arith.constant 0 : index
    %c0_3 = arith.constant 0 : index
    %2 = vector.load %arg2[%c0_2, %c0_3] : memref<34x128xf32, #tpu.memory_space<vmem>>, vector<34x128xf32>
    %cst = arith.constant dense<0.000000e+00> : vector<16x128xf32>
    %3 = tpu.matmul %1, %2, %cst {dimension_numbers = #tpu.dot_dimension_numbers<[1], [0], [0], [1], [0, 0, 1, 1], [], []>} : vector<16x34xf32>, vector<34x128xf32>, vector<16x128xf32> -> vector<16x128xf32>
    %c0_4 = arith.constant 0 : index
    %c0_5 = arith.constant 0 : index
    %4 = vector.load %arg3[%c0_4, %c0_5] : memref<32x256xf32, #tpu.memory_space<vmem>>, vector<32x256xf32>
    %5 = tpu.iota {dimensions = array<i32: 0>} : vector<2x128xi32>
    %c0_i32 = arith.constant 0 : i32
    %6 = vector.broadcast %c0_i32 : i32 to vector<2x128xi32>
    %7 = arith.cmpi eq, %5, %6 : vector<2x128xi32>
    %cst_6 = arith.constant 0.000000e+00 : f32
    %8 = vector.broadcast %cst_6 : f32 to vector<2x32xf32>
    %cst_7 = arith.constant 0.000000e+00 : f32
    %9 = vector.broadcast %cst_7 : f32 to vector<2x32xf32>
    %cst_8 = arith.constant dense<0.000000e+00> : vector<2x256xf32>
    %10 = tpu.matmul %8, %4, %cst_8 {dimension_numbers = #tpu.dot_dimension_numbers<[1], [0], [0], [1], [0, 0, 1, 1], [], []>} : vector<2x32xf32>, vector<32x256xf32>, vector<2x256xf32> -> vector<2x256xf32>
    %11 = vector.extract_strided_slice %10 {offsets = [0, 0], sizes = [2, 128], strides = [1, 1]} : vector<2x256xf32> to vector<2x128xf32>
    %12 = vector.extract_strided_slice %10 {offsets = [0, 128], sizes = [2, 128], strides = [1, 1]} : vector<2x256xf32> to vector<2x128xf32>
    %13 = arith.select %7, %11, %12 : vector<2x128xi1>, vector<2x128xf32>
    %14 = vector.extract_strided_slice %3 {offsets = [0, 0], sizes = [2, 128], strides = [1, 1]} : vector<16x128xf32> to vector<2x128xf32>
    %15 = arith.addf %13, %14 : vector<2x128xf32>
    %cst_9 = arith.constant 5.000000e-01 : f32
    %16 = vector.broadcast %cst_9 : f32 to vector<2x128xf32>
    %17 = arith.mulf %16, %15 : vector<2x128xf32>
    %18 = math.tanh %17 : vector<2x128xf32>
    %cst_10 = arith.constant 1.000000e+00 : f32
    %19 = vector.broadcast %cst_10 : f32 to vector<2x128xf32>
    %20 = arith.addf %18, %19 : vector<2x128xf32>
    %cst_11 = arith.constant 5.000000e-01 : f32
    %21 = vector.broadcast %cst_11 : f32 to vector<2x128xf32>
    %22 = arith.mulf %21, %20 : vector<2x128xf32>
    %23 = math.tanh %15 : vector<2x128xf32>
    %24 = vector.extract_strided_slice %22 {offsets = [0, 0], sizes = [2, 32], strides = [1, 1]} : vector<2x128xf32> to vector<2x32xf32>
    %25 = vector.extract_strided_slice %22 {offsets = [0, 32], sizes = [2, 32], strides = [1, 1]} : vector<2x128xf32> to vector<2x32xf32>
    %26 = vector.extract_strided_slice %23 {offsets = [0, 64], sizes = [2, 32], strides = [1, 1]} : vector<2x128xf32> to vector<2x32xf32>
    %27 = vector.extract_strided_slice %22 {offsets = [0, 96], sizes = [2, 32], strides = [1, 1]} : vector<2x128xf32> to vector<2x32xf32>
    %28 = arith.mulf %25, %9 : vector<2x32xf32>
    %29 = arith.mulf %24, %26 : vector<2x32xf32>
    %30 = arith.addf %28, %29 : vector<2x32xf32>
    %31 = math.tanh %30 : vector<2x32xf32>
    %32 = arith.mulf %27, %31 : vector<2x32xf32>
    %cst_12 = arith.constant dense<0.000000e+00> : vector<2x256xf32>
    %33 = tpu.matmul %32, %4, %cst_12 {dimension_numbers = #tpu.dot_dimension_numbers<[1], [0], [0], [1], [0, 0, 1, 1], [], []>} : vector<2x32xf32>, vector<32x256xf32>, vector<2x256xf32> -> vector<2x256xf32>
    %34 = vector.extract_strided_slice %33 {offsets = [0, 0], sizes = [2, 128], strides = [1, 1]} : vector<2x256xf32> to vector<2x128xf32>
    %35 = vector.extract_strided_slice %33 {offsets = [0, 128], sizes = [2, 128], strides = [1, 1]} : vector<2x256xf32> to vector<2x128xf32>
    %36 = arith.select %7, %34, %35 : vector<2x128xi1>, vector<2x128xf32>
    %37 = vector.extract_strided_slice %3 {offsets = [2, 0], sizes = [2, 128], strides = [1, 1]} : vector<16x128xf32> to vector<2x128xf32>
    %38 = arith.addf %36, %37 : vector<2x128xf32>
    %cst_13 = arith.constant 5.000000e-01 : f32
    %39 = vector.broadcast %cst_13 : f32 to vector<2x128xf32>
    %40 = arith.mulf %39, %38 : vector<2x128xf32>
    %41 = math.tanh %40 : vector<2x128xf32>
    %cst_14 = arith.constant 1.000000e+00 : f32
    %42 = vector.broadcast %cst_14 : f32 to vector<2x128xf32>
    %43 = arith.addf %41, %42 : vector<2x128xf32>
    %cst_15 = arith.constant 5.000000e-01 : f32
    %44 = vector.broadcast %cst_15 : f32 to vector<2x128xf32>
    %45 = arith.mulf %44, %43 : vector<2x128xf32>
    %46 = math.tanh %38 : vector<2x128xf32>
    %47 = vector.extract_strided_slice %45 {offsets = [0, 0], sizes = [2, 32], strides = [1, 1]} : vector<2x128xf32> to vector<2x32xf32>
    %48 = vector.extract_strided_slice %45 {offsets = [0, 32], sizes = [2, 32], strides = [1, 1]} : vector<2x128xf32> to vector<2x32xf32>
    %49 = vector.extract_strided_slice %46 {offsets = [0, 64], sizes = [2, 32], strides = [1, 1]} : vector<2x128xf32> to vector<2x32xf32>
    %50 = vector.extract_strided_slice %45 {offsets = [0, 96], sizes = [2, 32], strides = [1, 1]} : vector<2x128xf32> to vector<2x32xf32>
    %51 = arith.mulf %48, %30 : vector<2x32xf32>
    %52 = arith.mulf %47, %49 : vector<2x32xf32>
    %53 = arith.addf %51, %52 : vector<2x32xf32>
    %54 = math.tanh %53 : vector<2x32xf32>
    %55 = arith.mulf %50, %54 : vector<2x32xf32>
    %cst_16 = arith.constant dense<0.000000e+00> : vector<2x256xf32>
    %56 = tpu.matmul %55, %4, %cst_16 {dimension_numbers = #tpu.dot_dimension_numbers<[1], [0], [0], [1], [0, 0, 1, 1], [], []>} : vector<2x32xf32>, vector<32x256xf32>, vector<2x256xf32> -> vector<2x256xf32>
    %57 = vector.extract_strided_slice %56 {offsets = [0, 0], sizes = [2, 128], strides = [1, 1]} : vector<2x256xf32> to vector<2x128xf32>
    %58 = vector.extract_strided_slice %56 {offsets = [0, 128], sizes = [2, 128], strides = [1, 1]} : vector<2x256xf32> to vector<2x128xf32>
    %59 = arith.select %7, %57, %58 : vector<2x128xi1>, vector<2x128xf32>
    %60 = vector.extract_strided_slice %3 {offsets = [4, 0], sizes = [2, 128], strides = [1, 1]} : vector<16x128xf32> to vector<2x128xf32>
    %61 = arith.addf %59, %60 : vector<2x128xf32>
    %cst_17 = arith.constant 5.000000e-01 : f32
    %62 = vector.broadcast %cst_17 : f32 to vector<2x128xf32>
    %63 = arith.mulf %62, %61 : vector<2x128xf32>
    %64 = math.tanh %63 : vector<2x128xf32>
    %cst_18 = arith.constant 1.000000e+00 : f32
    %65 = vector.broadcast %cst_18 : f32 to vector<2x128xf32>
    %66 = arith.addf %64, %65 : vector<2x128xf32>
    %cst_19 = arith.constant 5.000000e-01 : f32
    %67 = vector.broadcast %cst_19 : f32 to vector<2x128xf32>
    %68 = arith.mulf %67, %66 : vector<2x128xf32>
    %69 = math.tanh %61 : vector<2x128xf32>
    %70 = vector.extract_strided_slice %68 {offsets = [0, 0], sizes = [2, 32], strides = [1, 1]} : vector<2x128xf32> to vector<2x32xf32>
    %71 = vector.extract_strided_slice %68 {offsets = [0, 32], sizes = [2, 32], strides = [1, 1]} : vector<2x128xf32> to vector<2x32xf32>
    %72 = vector.extract_strided_slice %69 {offsets = [0, 64], sizes = [2, 32], strides = [1, 1]} : vector<2x128xf32> to vector<2x32xf32>
    %73 = vector.extract_strided_slice %68 {offsets = [0, 96], sizes = [2, 32], strides = [1, 1]} : vector<2x128xf32> to vector<2x32xf32>
    %74 = arith.mulf %71, %53 : vector<2x32xf32>
    %75 = arith.mulf %70, %72 : vector<2x32xf32>
    %76 = arith.addf %74, %75 : vector<2x32xf32>
    %77 = math.tanh %76 : vector<2x32xf32>
    %78 = arith.mulf %73, %77 : vector<2x32xf32>
    %cst_20 = arith.constant dense<0.000000e+00> : vector<2x256xf32>
    %79 = tpu.matmul %78, %4, %cst_20 {dimension_numbers = #tpu.dot_dimension_numbers<[1], [0], [0], [1], [0, 0, 1, 1], [], []>} : vector<2x32xf32>, vector<32x256xf32>, vector<2x256xf32> -> vector<2x256xf32>
    %80 = vector.extract_strided_slice %79 {offsets = [0, 0], sizes = [2, 128], strides = [1, 1]} : vector<2x256xf32> to vector<2x128xf32>
    %81 = vector.extract_strided_slice %79 {offsets = [0, 128], sizes = [2, 128], strides = [1, 1]} : vector<2x256xf32> to vector<2x128xf32>
    %82 = arith.select %7, %80, %81 : vector<2x128xi1>, vector<2x128xf32>
    %83 = vector.extract_strided_slice %3 {offsets = [6, 0], sizes = [2, 128], strides = [1, 1]} : vector<16x128xf32> to vector<2x128xf32>
    %84 = arith.addf %82, %83 : vector<2x128xf32>
    %cst_21 = arith.constant 5.000000e-01 : f32
    %85 = vector.broadcast %cst_21 : f32 to vector<2x128xf32>
    %86 = arith.mulf %85, %84 : vector<2x128xf32>
    %87 = math.tanh %86 : vector<2x128xf32>
    %cst_22 = arith.constant 1.000000e+00 : f32
    %88 = vector.broadcast %cst_22 : f32 to vector<2x128xf32>
    %89 = arith.addf %87, %88 : vector<2x128xf32>
    %cst_23 = arith.constant 5.000000e-01 : f32
    %90 = vector.broadcast %cst_23 : f32 to vector<2x128xf32>
    %91 = arith.mulf %90, %89 : vector<2x128xf32>
    %92 = math.tanh %84 : vector<2x128xf32>
    %93 = vector.extract_strided_slice %91 {offsets = [0, 0], sizes = [2, 32], strides = [1, 1]} : vector<2x128xf32> to vector<2x32xf32>
    %94 = vector.extract_strided_slice %91 {offsets = [0, 32], sizes = [2, 32], strides = [1, 1]} : vector<2x128xf32> to vector<2x32xf32>
    %95 = vector.extract_strided_slice %92 {offsets = [0, 64], sizes = [2, 32], strides = [1, 1]} : vector<2x128xf32> to vector<2x32xf32>
    %96 = vector.extract_strided_slice %91 {offsets = [0, 96], sizes = [2, 32], strides = [1, 1]} : vector<2x128xf32> to vector<2x32xf32>
    %97 = arith.mulf %94, %76 : vector<2x32xf32>
    %98 = arith.mulf %93, %95 : vector<2x32xf32>
    %99 = arith.addf %97, %98 : vector<2x32xf32>
    %100 = math.tanh %99 : vector<2x32xf32>
    %101 = arith.mulf %96, %100 : vector<2x32xf32>
    %cst_24 = arith.constant dense<0.000000e+00> : vector<2x256xf32>
    %102 = tpu.matmul %101, %4, %cst_24 {dimension_numbers = #tpu.dot_dimension_numbers<[1], [0], [0], [1], [0, 0, 1, 1], [], []>} : vector<2x32xf32>, vector<32x256xf32>, vector<2x256xf32> -> vector<2x256xf32>
    %103 = vector.extract_strided_slice %102 {offsets = [0, 0], sizes = [2, 128], strides = [1, 1]} : vector<2x256xf32> to vector<2x128xf32>
    %104 = vector.extract_strided_slice %102 {offsets = [0, 128], sizes = [2, 128], strides = [1, 1]} : vector<2x256xf32> to vector<2x128xf32>
    %105 = arith.select %7, %103, %104 : vector<2x128xi1>, vector<2x128xf32>
    %106 = vector.extract_strided_slice %3 {offsets = [8, 0], sizes = [2, 128], strides = [1, 1]} : vector<16x128xf32> to vector<2x128xf32>
    %107 = arith.addf %105, %106 : vector<2x128xf32>
    %cst_25 = arith.constant 5.000000e-01 : f32
    %108 = vector.broadcast %cst_25 : f32 to vector<2x128xf32>
    %109 = arith.mulf %108, %107 : vector<2x128xf32>
    %110 = math.tanh %109 : vector<2x128xf32>
    %cst_26 = arith.constant 1.000000e+00 : f32
    %111 = vector.broadcast %cst_26 : f32 to vector<2x128xf32>
    %112 = arith.addf %110, %111 : vector<2x128xf32>
    %cst_27 = arith.constant 5.000000e-01 : f32
    %113 = vector.broadcast %cst_27 : f32 to vector<2x128xf32>
    %114 = arith.mulf %113, %112 : vector<2x128xf32>
    %115 = math.tanh %107 : vector<2x128xf32>
    %116 = vector.extract_strided_slice %114 {offsets = [0, 0], sizes = [2, 32], strides = [1, 1]} : vector<2x128xf32> to vector<2x32xf32>
    %117 = vector.extract_strided_slice %114 {offsets = [0, 32], sizes = [2, 32], strides = [1, 1]} : vector<2x128xf32> to vector<2x32xf32>
    %118 = vector.extract_strided_slice %115 {offsets = [0, 64], sizes = [2, 32], strides = [1, 1]} : vector<2x128xf32> to vector<2x32xf32>
    %119 = vector.extract_strided_slice %114 {offsets = [0, 96], sizes = [2, 32], strides = [1, 1]} : vector<2x128xf32> to vector<2x32xf32>
    %120 = arith.mulf %117, %99 : vector<2x32xf32>
    %121 = arith.mulf %116, %118 : vector<2x32xf32>
    %122 = arith.addf %120, %121 : vector<2x32xf32>
    %123 = math.tanh %122 : vector<2x32xf32>
    %124 = arith.mulf %119, %123 : vector<2x32xf32>
    %cst_28 = arith.constant dense<0.000000e+00> : vector<2x256xf32>
    %125 = tpu.matmul %124, %4, %cst_28 {dimension_numbers = #tpu.dot_dimension_numbers<[1], [0], [0], [1], [0, 0, 1, 1], [], []>} : vector<2x32xf32>, vector<32x256xf32>, vector<2x256xf32> -> vector<2x256xf32>
    %126 = vector.extract_strided_slice %125 {offsets = [0, 0], sizes = [2, 128], strides = [1, 1]} : vector<2x256xf32> to vector<2x128xf32>
    %127 = vector.extract_strided_slice %125 {offsets = [0, 128], sizes = [2, 128], strides = [1, 1]} : vector<2x256xf32> to vector<2x128xf32>
    %128 = arith.select %7, %126, %127 : vector<2x128xi1>, vector<2x128xf32>
    %129 = vector.extract_strided_slice %3 {offsets = [10, 0], sizes = [2, 128], strides = [1, 1]} : vector<16x128xf32> to vector<2x128xf32>
    %130 = arith.addf %128, %129 : vector<2x128xf32>
    %cst_29 = arith.constant 5.000000e-01 : f32
    %131 = vector.broadcast %cst_29 : f32 to vector<2x128xf32>
    %132 = arith.mulf %131, %130 : vector<2x128xf32>
    %133 = math.tanh %132 : vector<2x128xf32>
    %cst_30 = arith.constant 1.000000e+00 : f32
    %134 = vector.broadcast %cst_30 : f32 to vector<2x128xf32>
    %135 = arith.addf %133, %134 : vector<2x128xf32>
    %cst_31 = arith.constant 5.000000e-01 : f32
    %136 = vector.broadcast %cst_31 : f32 to vector<2x128xf32>
    %137 = arith.mulf %136, %135 : vector<2x128xf32>
    %138 = math.tanh %130 : vector<2x128xf32>
    %139 = vector.extract_strided_slice %137 {offsets = [0, 0], sizes = [2, 32], strides = [1, 1]} : vector<2x128xf32> to vector<2x32xf32>
    %140 = vector.extract_strided_slice %137 {offsets = [0, 32], sizes = [2, 32], strides = [1, 1]} : vector<2x128xf32> to vector<2x32xf32>
    %141 = vector.extract_strided_slice %138 {offsets = [0, 64], sizes = [2, 32], strides = [1, 1]} : vector<2x128xf32> to vector<2x32xf32>
    %142 = vector.extract_strided_slice %137 {offsets = [0, 96], sizes = [2, 32], strides = [1, 1]} : vector<2x128xf32> to vector<2x32xf32>
    %143 = arith.mulf %140, %122 : vector<2x32xf32>
    %144 = arith.mulf %139, %141 : vector<2x32xf32>
    %145 = arith.addf %143, %144 : vector<2x32xf32>
    %146 = math.tanh %145 : vector<2x32xf32>
    %147 = arith.mulf %142, %146 : vector<2x32xf32>
    %cst_32 = arith.constant dense<0.000000e+00> : vector<2x256xf32>
    %148 = tpu.matmul %147, %4, %cst_32 {dimension_numbers = #tpu.dot_dimension_numbers<[1], [0], [0], [1], [0, 0, 1, 1], [], []>} : vector<2x32xf32>, vector<32x256xf32>, vector<2x256xf32> -> vector<2x256xf32>
    %149 = vector.extract_strided_slice %148 {offsets = [0, 0], sizes = [2, 128], strides = [1, 1]} : vector<2x256xf32> to vector<2x128xf32>
    %150 = vector.extract_strided_slice %148 {offsets = [0, 128], sizes = [2, 128], strides = [1, 1]} : vector<2x256xf32> to vector<2x128xf32>
    %151 = arith.select %7, %149, %150 : vector<2x128xi1>, vector<2x128xf32>
    %152 = vector.extract_strided_slice %3 {offsets = [12, 0], sizes = [2, 128], strides = [1, 1]} : vector<16x128xf32> to vector<2x128xf32>
    %153 = arith.addf %151, %152 : vector<2x128xf32>
    %cst_33 = arith.constant 5.000000e-01 : f32
    %154 = vector.broadcast %cst_33 : f32 to vector<2x128xf32>
    %155 = arith.mulf %154, %153 : vector<2x128xf32>
    %156 = math.tanh %155 : vector<2x128xf32>
    %cst_34 = arith.constant 1.000000e+00 : f32
    %157 = vector.broadcast %cst_34 : f32 to vector<2x128xf32>
    %158 = arith.addf %156, %157 : vector<2x128xf32>
    %cst_35 = arith.constant 5.000000e-01 : f32
    %159 = vector.broadcast %cst_35 : f32 to vector<2x128xf32>
    %160 = arith.mulf %159, %158 : vector<2x128xf32>
    %161 = math.tanh %153 : vector<2x128xf32>
    %162 = vector.extract_strided_slice %160 {offsets = [0, 0], sizes = [2, 32], strides = [1, 1]} : vector<2x128xf32> to vector<2x32xf32>
    %163 = vector.extract_strided_slice %160 {offsets = [0, 32], sizes = [2, 32], strides = [1, 1]} : vector<2x128xf32> to vector<2x32xf32>
    %164 = vector.extract_strided_slice %161 {offsets = [0, 64], sizes = [2, 32], strides = [1, 1]} : vector<2x128xf32> to vector<2x32xf32>
    %165 = vector.extract_strided_slice %160 {offsets = [0, 96], sizes = [2, 32], strides = [1, 1]} : vector<2x128xf32> to vector<2x32xf32>
    %166 = arith.mulf %163, %145 : vector<2x32xf32>
    %167 = arith.mulf %162, %164 : vector<2x32xf32>
    %168 = arith.addf %166, %167 : vector<2x32xf32>
    %169 = math.tanh %168 : vector<2x32xf32>
    %170 = arith.mulf %165, %169 : vector<2x32xf32>
    %cst_36 = arith.constant dense<0.000000e+00> : vector<2x256xf32>
    %171 = tpu.matmul %170, %4, %cst_36 {dimension_numbers = #tpu.dot_dimension_numbers<[1], [0], [0], [1], [0, 0, 1, 1], [], []>} : vector<2x32xf32>, vector<32x256xf32>, vector<2x256xf32> -> vector<2x256xf32>
    %172 = vector.extract_strided_slice %171 {offsets = [0, 0], sizes = [2, 128], strides = [1, 1]} : vector<2x256xf32> to vector<2x128xf32>
    %173 = vector.extract_strided_slice %171 {offsets = [0, 128], sizes = [2, 128], strides = [1, 1]} : vector<2x256xf32> to vector<2x128xf32>
    %174 = arith.select %7, %172, %173 : vector<2x128xi1>, vector<2x128xf32>
    %175 = vector.extract_strided_slice %3 {offsets = [14, 0], sizes = [2, 128], strides = [1, 1]} : vector<16x128xf32> to vector<2x128xf32>
    %176 = arith.addf %174, %175 : vector<2x128xf32>
    %cst_37 = arith.constant 5.000000e-01 : f32
    %177 = vector.broadcast %cst_37 : f32 to vector<2x128xf32>
    %178 = arith.mulf %177, %176 : vector<2x128xf32>
    %179 = math.tanh %178 : vector<2x128xf32>
    %cst_38 = arith.constant 1.000000e+00 : f32
    %180 = vector.broadcast %cst_38 : f32 to vector<2x128xf32>
    %181 = arith.addf %179, %180 : vector<2x128xf32>
    %cst_39 = arith.constant 5.000000e-01 : f32
    %182 = vector.broadcast %cst_39 : f32 to vector<2x128xf32>
    %183 = arith.mulf %182, %181 : vector<2x128xf32>
    %184 = math.tanh %176 : vector<2x128xf32>
    %185 = vector.extract_strided_slice %183 {offsets = [0, 0], sizes = [2, 32], strides = [1, 1]} : vector<2x128xf32> to vector<2x32xf32>
    %186 = vector.extract_strided_slice %183 {offsets = [0, 32], sizes = [2, 32], strides = [1, 1]} : vector<2x128xf32> to vector<2x32xf32>
    %187 = vector.extract_strided_slice %184 {offsets = [0, 64], sizes = [2, 32], strides = [1, 1]} : vector<2x128xf32> to vector<2x32xf32>
    %188 = vector.extract_strided_slice %183 {offsets = [0, 96], sizes = [2, 32], strides = [1, 1]} : vector<2x128xf32> to vector<2x32xf32>
    %189 = arith.mulf %186, %168 : vector<2x32xf32>
    %190 = arith.mulf %185, %187 : vector<2x32xf32>
    %191 = arith.addf %189, %190 : vector<2x32xf32>
    %192 = math.tanh %191 : vector<2x32xf32>
    %193 = arith.mulf %188, %192 : vector<2x32xf32>
    %194 = vector.extract_strided_slice %32 {offsets = [0, 0], sizes = [1, 32], strides = [1, 1]} : vector<2x32xf32> to vector<1x32xf32>
    %195 = vector.extract_strided_slice %55 {offsets = [0, 0], sizes = [1, 32], strides = [1, 1]} : vector<2x32xf32> to vector<1x32xf32>
    %196 = vector.extract_strided_slice %78 {offsets = [0, 0], sizes = [1, 32], strides = [1, 1]} : vector<2x32xf32> to vector<1x32xf32>
    %197 = vector.extract_strided_slice %101 {offsets = [0, 0], sizes = [1, 32], strides = [1, 1]} : vector<2x32xf32> to vector<1x32xf32>
    %198 = vector.extract_strided_slice %124 {offsets = [0, 0], sizes = [1, 32], strides = [1, 1]} : vector<2x32xf32> to vector<1x32xf32>
    %199 = vector.extract_strided_slice %147 {offsets = [0, 0], sizes = [1, 32], strides = [1, 1]} : vector<2x32xf32> to vector<1x32xf32>
    %200 = vector.extract_strided_slice %170 {offsets = [0, 0], sizes = [1, 32], strides = [1, 1]} : vector<2x32xf32> to vector<1x32xf32>
    %201 = vector.extract_strided_slice %193 {offsets = [0, 0], sizes = [1, 32], strides = [1, 1]} : vector<2x32xf32> to vector<1x32xf32>
    %202 = tpu.concatenate %194, %195, %196, %197, %198, %199, %200, %201 in 0 : vector<1x32xf32>, vector<1x32xf32>, vector<1x32xf32>, vector<1x32xf32>, vector<1x32xf32>, vector<1x32xf32>, vector<1x32xf32>, vector<1x32xf32> -> vector<8x32xf32>
    %203 = vector.extract_strided_slice %193 {offsets = [1, 0], sizes = [1, 32], strides = [1, 1]} : vector<2x32xf32> to vector<1x32xf32>
    %204 = vector.extract_strided_slice %170 {offsets = [1, 0], sizes = [1, 32], strides = [1, 1]} : vector<2x32xf32> to vector<1x32xf32>
    %205 = vector.extract_strided_slice %147 {offsets = [1, 0], sizes = [1, 32], strides = [1, 1]} : vector<2x32xf32> to vector<1x32xf32>
    %206 = vector.extract_strided_slice %124 {offsets = [1, 0], sizes = [1, 32], strides = [1, 1]} : vector<2x32xf32> to vector<1x32xf32>
    %207 = vector.extract_strided_slice %101 {offsets = [1, 0], sizes = [1, 32], strides = [1, 1]} : vector<2x32xf32> to vector<1x32xf32>
    %208 = vector.extract_strided_slice %78 {offsets = [1, 0], sizes = [1, 32], strides = [1, 1]} : vector<2x32xf32> to vector<1x32xf32>
    %209 = vector.extract_strided_slice %55 {offsets = [1, 0], sizes = [1, 32], strides = [1, 1]} : vector<2x32xf32> to vector<1x32xf32>
    %210 = vector.extract_strided_slice %32 {offsets = [1, 0], sizes = [1, 32], strides = [1, 1]} : vector<2x32xf32> to vector<1x32xf32>
    %211 = tpu.concatenate %203, %204, %205, %206, %207, %208, %209, %210 in 0 : vector<1x32xf32>, vector<1x32xf32>, vector<1x32xf32>, vector<1x32xf32>, vector<1x32xf32>, vector<1x32xf32>, vector<1x32xf32>, vector<1x32xf32> -> vector<8x32xf32>
    %212 = tpu.concatenate %202, %211 in 1 : vector<8x32xf32>, vector<8x32xf32> -> vector<8x64xf32>
    %c0_40 = arith.constant 0 : index
    %c0_41 = arith.constant 0 : index
    %213 = vector.load %arg4[%c0_40, %c0_41] : memref<64x32xf32, #tpu.memory_space<vmem>>, vector<64x32xf32>
    %cst_42 = arith.constant dense<0.000000e+00> : vector<8x32xf32>
    %214 = tpu.matmul %212, %213, %cst_42 {dimension_numbers = #tpu.dot_dimension_numbers<[1], [0], [0], [1], [0, 0, 1, 1], [], []>} : vector<8x64xf32>, vector<64x32xf32>, vector<8x32xf32> -> vector<8x32xf32>
    %c0_43 = arith.constant 0 : index
    %c0_44 = arith.constant 0 : index
    %215 = vector.load %arg5[%c0_43, %c0_44] : memref<1x32xf32, #tpu.memory_space<vmem>>, vector<1x32xf32>
    %216 = vector.broadcast %215 : vector<1x32xf32> to vector<8x32xf32>
    %217 = arith.addf %214, %216 : vector<8x32xf32>
    %c0_45 = arith.constant 0 : index
    %c0_46 = arith.constant 0 : index
    %218 = vector.load %arg6[%c0_45, %c0_46] : memref<32x96xf32, #tpu.memory_space<vmem>>, vector<32x96xf32>
    %cst_47 = arith.constant dense<0.000000e+00> : vector<8x96xf32>
    %219 = tpu.matmul %217, %218, %cst_47 {dimension_numbers = #tpu.dot_dimension_numbers<[1], [0], [0], [1], [0, 0, 1, 1], [], []>} : vector<8x32xf32>, vector<32x96xf32>, vector<8x96xf32> -> vector<8x96xf32>
    %c0_48 = arith.constant 0 : index
    %c0_49 = arith.constant 0 : index
    %220 = vector.load %arg7[%c0_48, %c0_49] : memref<1x96xf32, #tpu.memory_space<vmem>>, vector<1x96xf32>
    %221 = vector.broadcast %220 : vector<1x96xf32> to vector<8x96xf32>
    %222 = arith.addf %219, %221 : vector<8x96xf32>
    %223 = vector.extract_strided_slice %222 {offsets = [0, 0], sizes = [8, 32], strides = [1, 1]} : vector<8x96xf32> to vector<8x32xf32>
    %224 = vector.extract_strided_slice %222 {offsets = [0, 32], sizes = [8, 32], strides = [1, 1]} : vector<8x96xf32> to vector<8x32xf32>
    %225 = vector.extract_strided_slice %222 {offsets = [0, 64], sizes = [8, 32], strides = [1, 1]} : vector<8x96xf32> to vector<8x32xf32>
    %226 = tpu.concatenate %223, %223, %223, %223 in 0 : vector<8x32xf32>, vector<8x32xf32>, vector<8x32xf32>, vector<8x32xf32> -> vector<32x32xf32>
    %c0_50 = arith.constant 0 : index
    %c0_51 = arith.constant 0 : index
    %227 = vector.load %arg10[%c0_50, %c0_51] : memref<32x32xf32, #tpu.memory_space<vmem>>, vector<32x32xf32>
    %228 = arith.mulf %226, %227 : vector<32x32xf32>
    %cst_52 = arith.constant dense<0.000000e+00> : vector<32x8xf32>
    %229 = tpu.matmul %228, %224, %cst_52 {dimension_numbers = #tpu.dot_dimension_numbers<[1], [1], [0], [0], [0, 0, 1, 0], [], []>} : vector<32x32xf32>, vector<8x32xf32>, vector<32x8xf32> -> vector<32x8xf32>
    %cst_53 = arith.constant dense<0xFF800000> : vector<32xf32>
    %230 = vector.multi_reduction <maximumf>, %229, %cst_53 [1] : vector<32x8xf32> to vector<32xf32>
    %231 = vector.shape_cast %230 : vector<32xf32> to vector<32x1xf32>
    %232 = vector.broadcast %231 : vector<32x1xf32> to vector<32x8xf32>
    %233 = arith.subf %229, %232 : vector<32x8xf32>
    %234 = math.exp %233 : vector<32x8xf32>
    %cst_54 = arith.constant dense<0.000000e+00> : vector<32xf32>
    %235 = vector.multi_reduction <add>, %234, %cst_54 [1] : vector<32x8xf32> to vector<32xf32>
    %236 = vector.shape_cast %235 : vector<32xf32> to vector<32x1xf32>
    %237 = tpu.reciprocal %236 {approx = true} : vector<32x1xf32> -> vector<32x1xf32>
    %238 = arith.mulf %236, %237 : vector<32x1xf32>
    %cst_55 = arith.constant 2.000000e+00 : f32
    %239 = vector.broadcast %cst_55 : f32 to vector<32x1xf32>
    %240 = arith.subf %239, %238 : vector<32x1xf32>
    %241 = arith.mulf %237, %240 : vector<32x1xf32>
    %242 = vector.broadcast %241 : vector<32x1xf32> to vector<32x8xf32>
    %243 = arith.mulf %234, %242 : vector<32x8xf32>
    %244 = vector.extract_strided_slice %243 {offsets = [0, 0], sizes = [8, 8], strides = [1, 1]} : vector<32x8xf32> to vector<8x8xf32>
    %245 = vector.extract_strided_slice %243 {offsets = [8, 0], sizes = [8, 8], strides = [1, 1]} : vector<32x8xf32> to vector<8x8xf32>
    %246 = arith.addf %244, %245 : vector<8x8xf32>
    %247 = vector.extract_strided_slice %243 {offsets = [16, 0], sizes = [8, 8], strides = [1, 1]} : vector<32x8xf32> to vector<8x8xf32>
    %248 = arith.addf %246, %247 : vector<8x8xf32>
    %249 = vector.extract_strided_slice %243 {offsets = [24, 0], sizes = [8, 8], strides = [1, 1]} : vector<32x8xf32> to vector<8x8xf32>
    %250 = arith.addf %248, %249 : vector<8x8xf32>
    %cst_56 = arith.constant 2.500000e-01 : f32
    %251 = vector.broadcast %cst_56 : f32 to vector<8x8xf32>
    %252 = arith.mulf %250, %251 : vector<8x8xf32>
    %c0_57 = arith.constant 0 : index
    %c0_58 = arith.constant 0 : index
    %c0_59 = arith.constant 0 : index
    %253 = vector.load %arg13[%c0_57, %c0_58, %c0_59] : memref<1x8x8xf32, #tpu.memory_space<vmem>>, vector<1x8x8xf32>
    %254 = vector.shape_cast %253 : vector<1x8x8xf32> to vector<8x8xf32>
    %255 = vector.shape_cast %252 : vector<8x8xf32> to vector<1x8x8xf32>
    tpu.vector_store %arg13[%c0_57, %c0_58, %c0_59], %255 {strides = array<i32>} : memref<1x8x8xf32, #tpu.memory_space<vmem>>, vector<1x8x8xf32>,
    %256 = vector.extract_strided_slice %243 {offsets = [7, 0], sizes = [1, 8], strides = [1, 1]} : vector<32x8xf32> to vector<1x8xf32>
    %257 = vector.extract_strided_slice %243 {offsets = [15, 0], sizes = [1, 8], strides = [1, 1]} : vector<32x8xf32> to vector<1x8xf32>
    %258 = vector.extract_strided_slice %243 {offsets = [23, 0], sizes = [1, 8], strides = [1, 1]} : vector<32x8xf32> to vector<1x8xf32>
    %259 = vector.extract_strided_slice %243 {offsets = [31, 0], sizes = [1, 8], strides = [1, 1]} : vector<32x8xf32> to vector<1x8xf32>
    %260 = tpu.concatenate %256, %257, %258, %259 in 0 : vector<1x8xf32>, vector<1x8xf32>, vector<1x8xf32>, vector<1x8xf32> -> vector<4x8xf32>
    %cst_60 = arith.constant dense<0.000000e+00> : vector<4x32xf32>
    %261 = tpu.matmul %260, %225, %cst_60 {dimension_numbers = #tpu.dot_dimension_numbers<[1], [0], [0], [1], [0, 0, 1, 1], [], []>} : vector<4x8xf32>, vector<8x32xf32>, vector<4x32xf32> -> vector<4x32xf32>
    %c0_61 = arith.constant 0 : index
    %c0_62 = arith.constant 0 : index
    %262 = vector.load %arg11[%c0_61, %c0_62] : memref<4x32xf32, #tpu.memory_space<vmem>>, vector<4x32xf32>
    %263 = arith.mulf %261, %262 : vector<4x32xf32>
    %cst_63 = arith.constant dense<0.000000e+00> : vector<32xf32>
    %264 = vector.multi_reduction <add>, %263, %cst_63 [0] : vector<4x32xf32> to vector<32xf32>
    %265 = vector.shape_cast %264 : vector<32xf32> to vector<1x32xf32>
    %c0_64 = arith.constant 0 : index
    %c0_65 = arith.constant 0 : index
    %266 = vector.load %arg8[%c0_64, %c0_65] : memref<32x32xf32, #tpu.memory_space<vmem>>, vector<32x32xf32>
    %cst_66 = arith.constant dense<0.000000e+00> : vector<1x32xf32>
    %267 = tpu.matmul %265, %266, %cst_66 {dimension_numbers = #tpu.dot_dimension_numbers<[1], [0], [0], [1], [0, 0, 1, 1], [], []>} : vector<1x32xf32>, vector<32x32xf32>, vector<1x32xf32> -> vector<1x32xf32>
    %c0_67 = arith.constant 0 : index
    %c0_68 = arith.constant 0 : index
    %268 = vector.load %arg9[%c0_67, %c0_68] : memref<1x32xf32, #tpu.memory_space<vmem>>, vector<1x32xf32>
    %269 = arith.addf %267, %268 : vector<1x32xf32>
    %c0_69 = arith.constant 0 : index
    %c0_70 = arith.constant 0 : index
    %c0_71 = arith.constant 0 : index
    %270 = vector.load %arg12[%c0_69, %c0_70, %c0_71] : memref<1x1x32xf32, #tpu.memory_space<vmem>>, vector<1x1x32xf32>
    %271 = vector.shape_cast %270 : vector<1x1x32xf32> to vector<1x32xf32>
    %272 = vector.shape_cast %269 : vector<1x32xf32> to vector<1x1x32xf32>
    tpu.vector_store %arg12[%c0_69, %c0_70, %c0_71], %272 {strides = array<i32>} : memref<1x1x32xf32, #tpu.memory_space<vmem>>, vector<1x1x32xf32>,
    return
  }
  func.func @transform_0(%arg0: i32) -> (i32, i32, i32) {
    %c0_i32 = arith.constant 0 : i32
    %c0_i32_0 = arith.constant 0 : i32
    %c0_i32_1 = arith.constant 0 : i32
    return %arg0, %c0_i32, %c0_i32_0 : i32, i32, i32
  }
  func.func @transform_1(%arg0: i32) -> (i32, i32) {
    %c0_i32 = arith.constant 0 : i32
    %c0_i32_0 = arith.constant 0 : i32
    %c0_i32_1 = arith.constant 0 : i32
    return %c0_i32, %c0_i32_0 : i32, i32
  }
  func.func @transform_2(%arg0: i32) -> (i32, i32) {
    %c0_i32 = arith.constant 0 : i32
    %c0_i32_0 = arith.constant 0 : i32
    %c0_i32_1 = arith.constant 0 : i32
    return %c0_i32, %c0_i32_0 : i32, i32
  }
  func.func @transform_3(%arg0: i32) -> (i32, i32) {
    %c0_i32 = arith.constant 0 : i32
    %c0_i32_0 = arith.constant 0 : i32
    %c0_i32_1 = arith.constant 0 : i32
    return %c0_i32, %c0_i32_0 : i32, i32
  }
  func.func @transform_4(%arg0: i32) -> (i32, i32) {
    %c0_i32 = arith.constant 0 : i32
    %c0_i32_0 = arith.constant 0 : i32
    %c0_i32_1 = arith.constant 0 : i32
    return %c0_i32, %c0_i32_0 : i32, i32
  }
  func.func @transform_5(%arg0: i32) -> (i32, i32) {
    %c0_i32 = arith.constant 0 : i32
    %c0_i32_0 = arith.constant 0 : i32
    %c0_i32_1 = arith.constant 0 : i32
    return %c0_i32, %c0_i32_0 : i32, i32
  }
  func.func @transform_6(%arg0: i32) -> (i32, i32) {
    %c0_i32 = arith.constant 0 : i32
    %c0_i32_0 = arith.constant 0 : i32
    %c0_i32_1 = arith.constant 0 : i32
    return %c0_i32, %c0_i32_0 : i32, i32
  }
  func.func @transform_7(%arg0: i32) -> (i32, i32) {
    %c0_i32 = arith.constant 0 : i32
    %c0_i32_0 = arith.constant 0 : i32
    %c0_i32_1 = arith.constant 0 : i32
    return %c0_i32, %c0_i32_0 : i32, i32
  }
  func.func @transform_8(%arg0: i32) -> (i32, i32) {
    %c0_i32 = arith.constant 0 : i32
    %c0_i32_0 = arith.constant 0 : i32
    %c0_i32_1 = arith.constant 0 : i32
    return %c0_i32, %c0_i32_0 : i32, i32
  }
  func.func @transform_9(%arg0: i32) -> (i32, i32) {
    %c0_i32 = arith.constant 0 : i32
    %c0_i32_0 = arith.constant 0 : i32
    %c0_i32_1 = arith.constant 0 : i32
    return %c0_i32, %c0_i32_0 : i32, i32
  }
  func.func @transform_10(%arg0: i32) -> (i32, i32) {
    %c0_i32 = arith.constant 0 : i32
    %c0_i32_0 = arith.constant 0 : i32
    %c0_i32_1 = arith.constant 0 : i32
    return %c0_i32, %c0_i32_0 : i32, i32
  }
  func.func @transform_11(%arg0: i32) -> (i32, i32, i32) {
    %c0_i32 = arith.constant 0 : i32
    %c0_i32_0 = arith.constant 0 : i32
    %c0_i32_1 = arith.constant 0 : i32
    return %arg0, %c0_i32, %c0_i32_0 : i32, i32, i32
  }
  func.func @transform_12(%arg0: i32) -> (i32, i32, i32) {
    %c0_i32 = arith.constant 0 : i32
    %c0_i32_0 = arith.constant 0 : i32
    %c0_i32_1 = arith.constant 0 : i32
    return %arg0, %c0_i32, %c0_i32_0 : i32, i32, i32
  }
}

</mosaic_0001>

<llo_original>
// kernel: tpu_custom_call.1
$region0: #{tpu_custom_call.1}
  #allocation0 [shape = 'u32[]', space=smem, size = 0x4, offset = 0x4, fixed_abs, tag = 'smem constant byte address 0x4 - core index']
  #allocation1 [shape = 'u32[72,128]{1,0:T(1,128)}', space=vmem, size = 0x9000, scoped, tag = 'internal scratch']
  %s0 = inlined_call_operand.hbm [shape: f32[1,16,34], index: 0, kind: input, shape index: {}]
  %s1 = inlined_call_operand.hbm [shape: f32[34,128], index: 1, kind: input, shape index: {}]
  %s2 = inlined_call_operand.vmem [shape: f32[32,256], index: 2, kind: input, shape index: {}]
  %s3 = inlined_call_operand.vmem [shape: f32[64,32], index: 3, kind: input, shape index: {}]
  %s4 = inlined_call_operand.vmem [shape: f32[1,32], index: 4, kind: input, shape index: {}]
  %s5 = inlined_call_operand.vmem [shape: f32[32,96], index: 5, kind: input, shape index: {}]
  %s6 = inlined_call_operand.hbm [shape: f32[1,96], index: 6, kind: input, shape index: {}]
  %s7 = inlined_call_operand.hbm [shape: f32[32,32], index: 7, kind: input, shape index: {}]
  %s8 = inlined_call_operand.vmem [shape: f32[1,32], index: 8, kind: input, shape index: {}]
  %s9 = inlined_call_operand.hbm [shape: f32[32,32], index: 9, kind: input, shape index: {}]
  %s10 = inlined_call_operand.vmem [shape: f32[4,32], index: 10, kind: input, shape index: {}]
  %s11 = inlined_call_operand.hbm [shape: f32[1,1,32], index: 11, kind: output, shape index: {0}]
  %s12 = inlined_call_operand.hbm [shape: f32[1,8,8], index: 12, kind: output, shape index: {1}]
  %13 = xla_tuple %s11, %s12
  %s14 = sld [smem:[#allocation0]]
  $region82: #{tpu_custom_call.1} parent=0
    _
  %s16 = ssub.s32 1, %s14
  %s17 = scalar_select 0, %s16, %s14
  $region1: #{tpu_custom_call.1} parent=0
    #allocation2 [shape = 'u8[8192]{0}', space=vmem, size = 0x2000, scoped, tag = 'input window, operand 0, single buffered']
    #allocation3 [shape = 's32[1]{0}', space=sflag, size = 0x4, scoped, tag = 'scoped memory for tpu_custom_call.1']
    #allocation4 [shape = 's32[1]{0}', space=sflag, size = 0x4, scoped, tag = 'scoped memory for tpu_custom_call.1']
    #allocation5 [shape = 'u8[20480]{0}', space=vmem, size = 0x5000, scoped, tag = 'input window, operand 1, single buffered']
    #allocation6 [shape = 's32[1]{0}', space=sflag, size = 0x4, scoped, tag = 'scoped memory for tpu_custom_call.1']
    #allocation7 [shape = 'u8[512]{0}', space=vmem, size = 0x400, scoped, tag = 'input window, operand 6, single buffered']
    #allocation8 [shape = 'u8[16384]{0}', space=vmem, size = 0x4000, scoped, tag = 'input window, operand 7, single buffered']
    #allocation9 [shape = 's32[1]{0}', space=sflag, size = 0x4, scoped, tag = 'scoped memory for tpu_custom_call.1']
    #allocation10 [shape = 'u8[16384]{0}', space=vmem, size = 0x4000, scoped, tag = 'input window, operand 9, single buffered']
    #allocation11 [shape = 'u8[512]{0}', space=vmem, size = 0x400, scoped, tag = 'output window, operand 0, single buffered']
    #allocation12 [shape = 'u8[4096]{0}', space=vmem, size = 0x1000, scoped, tag = 'output window, operand 1, single buffered']
    #allocation13 [shape = 's32[1]{0}', space=sflag, size = 0x4, scoped, tag = 'scoped memory for tpu_custom_call.1']
    %18 = vsyncpa [#allocation3], 0
    %19 = vsyncpa [#allocation6], 0
    %20 = vsyncpa [#allocation9], 0
    %21 = vsyncpa [#allocation4], 0
    %22 = vsyncpa [#allocation13], 0
    // Predicated region
    $region2: #{tpu_custom_call.1} parent=1 // pred_check
      _
    $region3: #{tpu_custom_call.1} parent=1 // pred_check_branch
      %24 = sbr.rel (0) target = $region5
    $region4: #{tpu_custom_call.1} parent=1 // pred_region
      %26 = vsyncadd [#allocation3], 0
      %s27 = sshll.u32 %s0, 4
      %s28 = int_to_ptr.hbm [resolvable:$true] %s27
      %s29 = sshll.u32 [#allocation2], 4
      %s30 = int_to_ptr.vmem [resolvable:$true] %s29
      %35 = dma.hbm_to_vmem [thread:$0]  %s28, 256, %s30, [#allocation3], 128, 128, 8
    $region5: #{tpu_custom_call.1} parent=1 // pred_fallthru
      _
    // Predicated region
    $region6: #{tpu_custom_call.1} parent=1 // pred_check
      _
    $region7: #{tpu_custom_call.1} parent=1 // pred_check_branch
      %37 = sbr.rel (0) target = $region9
    $region8: #{tpu_custom_call.1} parent=1 // pred_region
      %39 = vsyncadd [#allocation6], 0
      %s40 = sshll.u32 %s1, 4
      %s41 = int_to_ptr.hbm [resolvable:$true] %s40
      %s42 = sshll.u32 [#allocation5], 4
      %s43 = int_to_ptr.vmem [resolvable:$true] %s42
      %48 = dma.hbm_to_vmem [thread:$0]  %s41, 640, %s43, [#allocation6], 128, 128, 8
    $region9: #{tpu_custom_call.1} parent=1 // pred_fallthru
      _
    // Predicated region
    $region10: #{tpu_custom_call.1} parent=1 // pred_check
      _
    $region11: #{tpu_custom_call.1} parent=1 // pred_check_branch
      %50 = sbr.rel (0) target = $region13
    $region12: #{tpu_custom_call.1} parent=1 // pred_region
      _
    $region13: #{tpu_custom_call.1} parent=1 // pred_fallthru
      _
    // Predicated region
    $region14: #{tpu_custom_call.1} parent=1 // pred_check
      _
    $region15: #{tpu_custom_call.1} parent=1 // pred_check_branch
      %52 = sbr.rel (0) target = $region17
    $region16: #{tpu_custom_call.1} parent=1 // pred_region
      _
    $region17: #{tpu_custom_call.1} parent=1 // pred_fallthru
      _
    // Predicated region
    $region18: #{tpu_custom_call.1} parent=1 // pred_check
      _
    $region19: #{tpu_custom_call.1} parent=1 // pred_check_branch
      %54 = sbr.rel (0) target = $region21
    $region20: #{tpu_custom_call.1} parent=1 // pred_region
      _
    $region21: #{tpu_custom_call.1} parent=1 // pred_fallthru
      _
    // Predicated region
    $region22: #{tpu_custom_call.1} parent=1 // pred_check
      _
    $region23: #{tpu_custom_call.1} parent=1 // pred_check_branch
      %56 = sbr.rel (0) target = $region25
    $region24: #{tpu_custom_call.1} parent=1 // pred_region
      _
    $region25: #{tpu_custom_call.1} parent=1 // pred_fallthru
      _
    // Predicated region
    $region26: #{tpu_custom_call.1} parent=1 // pred_check
      _
    $region27: #{tpu_custom_call.1} parent=1 // pred_check_branch
      %58 = sbr.rel (0) target = $region29
    $region28: #{tpu_custom_call.1} parent=1 // pred_region
      %60 = vsyncadd [#allocation6], 0
      %s62 = sshll.u32 %s6, 4
      %s63 = int_to_ptr.hbm [resolvable:$true] %s62
      %s64 = sshll.u32 [#allocation7], 4
      %s65 = int_to_ptr.vmem [resolvable:$true] %s64
      %67 = dma.hbm_to_vmem [thread:$0]  %s63, 16, %s65, [#allocation6]
    $region29: #{tpu_custom_call.1} parent=1 // pred_fallthru
      _
    // Predicated region
    $region30: #{tpu_custom_call.1} parent=1 // pred_check
      _
    $region31: #{tpu_custom_call.1} parent=1 // pred_check_branch
      %69 = sbr.rel (0) target = $region33
    $region32: #{tpu_custom_call.1} parent=1 // pred_region
      %71 = vsyncadd [#allocation9], 0
      %s72 = sshll.u32 %s7, 4
      %s73 = int_to_ptr.hbm [resolvable:$true] %s72
      %s74 = sshll.u32 [#allocation8], 4
      %s75 = int_to_ptr.vmem [resolvable:$true] %s74
      %80 = dma.hbm_to_vmem [thread:$0]  %s73, 512, %s75, [#allocation9], 128, 128, 8
    $region33: #{tpu_custom_call.1} parent=1 // pred_fallthru
      _
    // Predicated region
    $region34: #{tpu_custom_call.1} parent=1 // pred_check
      _
    $region35: #{tpu_custom_call.1} parent=1 // pred_check_branch
      %82 = sbr.rel (0) target = $region37
    $region36: #{tpu_custom_call.1} parent=1 // pred_region
      _
    $region37: #{tpu_custom_call.1} parent=1 // pred_fallthru
      _
    // Predicated region
    $region38: #{tpu_custom_call.1} parent=1 // pred_check
      _
    $region39: #{tpu_custom_call.1} parent=1 // pred_check_branch
      %84 = sbr.rel (0) target = $region41
    $region40: #{tpu_custom_call.1} parent=1 // pred_region
      %86 = vsyncadd [#allocation9], 0
      %s87 = sshll.u32 %s9, 4
      %s88 = int_to_ptr.hbm [resolvable:$true] %s87
      %s89 = sshll.u32 [#allocation10], 4
      %s90 = int_to_ptr.vmem [resolvable:$true] %s89
      %95 = dma.hbm_to_vmem [thread:$0]  %s88, 512, %s90, [#allocation9], 128, 128, 8
    $region41: #{tpu_custom_call.1} parent=1 // pred_fallthru
      _
    // Predicated region
    $region42: #{tpu_custom_call.1} parent=1 // pred_check
      _
    $region43: #{tpu_custom_call.1} parent=1 // pred_check_branch
      %97 = sbr.rel (0) target = $region45
    $region44: #{tpu_custom_call.1} parent=1 // pred_region
      _
    $region45: #{tpu_custom_call.1} parent=1 // pred_fallthru
      _
    // Predicated region
    $region46: #{tpu_custom_call.1} parent=1 // pred_check
      _
    $region47: #{tpu_custom_call.1} parent=1 // pred_check_branch
      %99 = sbr.rel (0) target = $region49
    $region48: #{tpu_custom_call.1} parent=1 // pred_region
      %101 = dma.done [#allocation3], 256
    $region49: #{tpu_custom_call.1} parent=1 // pred_fallthru
      _
    // Predicated region
    $region50: #{tpu_custom_call.1} parent=1 // pred_check
      _
    $region51: #{tpu_custom_call.1} parent=1 // pred_check_branch
      %103 = sbr.rel (0) target = $region53
    $region52: #{tpu_custom_call.1} parent=1 // pred_region
      %105 = dma.done [#allocation6], 640
    $region53: #{tpu_custom_call.1} parent=1 // pred_fallthru
      _
    // Predicated region
    $region54: #{tpu_custom_call.1} parent=1 // pred_check
      _
    $region55: #{tpu_custom_call.1} parent=1 // pred_check_branch
      %107 = sbr.rel (0) target = $region57
    $region56: #{tpu_custom_call.1} parent=1 // pred_region
      %109 = dma.done [#allocation6], 16
    $region57: #{tpu_custom_call.1} parent=1 // pred_fallthru
      _
    // Predicated region
    $region58: #{tpu_custom_call.1} parent=1 // pred_check
      _
    $region59: #{tpu_custom_call.1} parent=1 // pred_check_branch
      %111 = sbr.rel (0) target = $region61
    $region60: #{tpu_custom_call.1} parent=1 // pred_region
      %113 = dma.done [#allocation9], 512
    $region61: #{tpu_custom_call.1} parent=1 // pred_fallthru
      _
    // Predicated region
    $region62: #{tpu_custom_call.1} parent=1 // pred_check
      _
    $region63: #{tpu_custom_call.1} parent=1 // pred_check_branch
      %115 = sbr.rel (0) target = $region65
    $region64: #{tpu_custom_call.1} parent=1 // pred_region
      %117 = dma.done [#allocation9], 512
    $region65: #{tpu_custom_call.1} parent=1 // pred_fallthru
      _
    %v118 = vld [vmem:[#allocation2] sm:$0xff]
    %v119 = vld [vmem:[#allocation2 + $0x8] sm:$0xff]
    %v120 = vld [vmem:[#allocation5] sm:$0xff]
    %v121 = vld [vmem:[#allocation5 + $0x8] sm:$0xff]
    %v122 = vld [vmem:[#allocation5 + $0x10] sm:$0xff]
    %v123 = vld [vmem:[#allocation5 + $0x18] sm:$0xff]
    %v124 = vld [vmem:[#allocation5 + $0x20] sm:$0x3]
    %vm125 = vcmask 277504
    %v127 = vsel %vm125, %v118, 0
    %v130 = vsel %vm125, %v119, 0
    %vm132 = vcmask 1041408
    %v134 = vsel %vm132, %v124, 0
    %136 = vmatpush.msra.mxu0 0.0
    %137 = vmatpush.msra.mxu0 0.0
    %138 = vmatpush.msra.mxu0 0.0
    %139 = vmatpush.msra.mxu0 0.0
    %140 = vmatpush.msra.mxu0 0.0
    %141 = vmatpush.msra.mxu0 0.0
    %142 = vmatpush.msra.mxu0 0.0
    %143 = vmatpush.msra.mxu0 0.0
    %144 = vmatpush.msra.mxu0 0.0
    %145 = vmatpush.msra.mxu0 0.0
    %146 = vmatpush.msra.mxu0 0.0
    %147 = vmatpush.msra.mxu0 %v134
    %148 = vmatpush.msra.mxu0 %v123
    %149 = vmatpush.msra.mxu0 %v122
    %150 = vmatpush.msra.mxu0 %v121
    %151 = vmatpush.msra.mxu0 %v120
    %152 = vmatmul.f32.gmra.mxu0 %v127
    %v153 = vpop.f32.mrf.mxu0
    %v154 = vadd.f32 0.0, %v153
    %155 = vmatmul.f32.gmra.mxu0 %v130
    %v156 = vpop.f32.mrf.mxu0
    %v157 = vadd.f32 0.0, %v156
    %158 = vdwg.mxu0
    %v159 = vld [vmem:[%s2] sm:$0xff]
    %v160 = vld [vmem:[%s2 + $0x8] sm:$0xff]
    %v161 = vld [vmem:[%s2 + $0x10] sm:$0xff]
    %v162 = vld [vmem:[%s2 + $0x18] sm:$0xff]
    %v163 = vld [vmem:[%s2 + $0x20] sm:$0xff]
    %v164 = vld [vmem:[%s2 + $0x28] sm:$0xff]
    %v165 = vld [vmem:[%s2 + $0x30] sm:$0xff]
    %v166 = vld [vmem:[%s2 + $0x38] sm:$0xff]
    %v167 = vlaneseq
    %v168 = vshrl.u32 %v167, 7
    %vm169 = vcmp.eq.s32.totalorder %v168, 0
    %vm170 = vcmask 261120
    %v172 = vsel %vm170, 0.0, 0
    %174 = vmatpush.msra.mxu0 0.0
    %175 = vmatpush.msra.mxu0 0.0
    %176 = vmatpush.msra.mxu0 0.0
    %177 = vmatpush.msra.mxu0 0.0
    %178 = vmatpush.msra.mxu0 0.0
    %179 = vmatpush.msra.mxu0 0.0
    %180 = vmatpush.msra.mxu0 0.0
    %181 = vmatpush.msra.mxu0 0.0
    %182 = vmatpush.msra.mxu0 0.0
    %183 = vmatpush.msra.mxu0 0.0
    %184 = vmatpush.msra.mxu0 0.0
    %185 = vmatpush.msra.mxu0 0.0
    %186 = vmatpush.msra.mxu0 %v165
    %187 = vmatpush.msra.mxu0 %v163
    %188 = vmatpush.msra.mxu0 %v161
    %189 = vmatpush.msra.mxu0 %v159
    %190 = vmatmul.f32.gmra.mxu0 %v172
    %v191 = vpop.f32.mrf.mxu0
    %v192 = vadd.f32 0.0, %v191
    %193 = vdwg.mxu0
    %194 = vmatpush.msra.mxu0 0.0
    %195 = vmatpush.msra.mxu0 0.0
    %196 = vmatpush.msra.mxu0 0.0
    %197 = vmatpush.msra.mxu0 0.0
    %198 = vmatpush.msra.mxu0 0.0
    %199 = vmatpush.msra.mxu0 0.0
    %200 = vmatpush.msra.mxu0 0.0
    %201 = vmatpush.msra.mxu0 0.0
    %202 = vmatpush.msra.mxu0 0.0
    %203 = vmatpush.msra.mxu0 0.0
    %204 = vmatpush.msra.mxu0 0.0
    %205 = vmatpush.msra.mxu0 0.0
    %206 = vmatpush.msra.mxu0 %v166
    %207 = vmatpush.msra.mxu0 %v164
    %208 = vmatpush.msra.mxu0 %v162
    %209 = vmatpush.msra.mxu0 %v160
    %210 = vmatmul.f32.gmra.mxu0 %v172
    %v211 = vpop.f32.mrf.mxu0
    %v212 = vadd.f32 0.0, %v211
    %213 = vdwg.mxu0
    %v214 = vsel %vm169, %v192, %v212
    %v215 = vadd.f32 %v214, %v154
    %v216 = vmul.f32 %v215, 0.5
    %v217 = vtanh.pop %v216
    %v218 = vadd.f32 %v217, 1.0
    %v219 = vmul.f32 %v218, 0.5
    %v220 = vtanh.pop %v215
    %v221 = vmul.f32 %v219, 0.0
    %223 = vrot.lane.b32.xlu0 %v220, 64
    %v224 = vpop.permute.xlu0 %223
    %v226 = vmul.f32 %v219, %v224
    %228 = vrot.lane.b32.xlu0 %v226, 32
    %v229 = vpop.permute.xlu0 %228
    %v231 = vadd.f32 %v221, %v229
    %v232 = vtanh.pop %v231
    %234 = vrot.lane.b32.xlu0 %v232, 64
    %v235 = vpop.permute.xlu0 %234
    %v237 = vmul.f32 %v219, %v235
    %239 = vrot.lane.b32.xlu0 %v237, 32
    %v240 = vpop.permute.xlu0 %239
    %v241 = vsel %vm170, %v240, 0
    %243 = vmatpush.msra.mxu0 0.0
    %244 = vmatpush.msra.mxu0 0.0
    %245 = vmatpush.msra.mxu0 0.0
    %246 = vmatpush.msra.mxu0 0.0
    %247 = vmatpush.msra.mxu0 0.0
    %248 = vmatpush.msra.mxu0 0.0
    %249 = vmatpush.msra.mxu0 0.0
    %250 = vmatpush.msra.mxu0 0.0
    %251 = vmatpush.msra.mxu0 0.0
    %252 = vmatpush.msra.mxu0 0.0
    %253 = vmatpush.msra.mxu0 0.0
    %254 = vmatpush.msra.mxu0 0.0
    %255 = vmatpush.msra.mxu0 %v165
    %256 = vmatpush.msra.mxu0 %v163
    %257 = vmatpush.msra.mxu0 %v161
    %258 = vmatpush.msra.mxu0 %v159
    %259 = vmatmul.f32.gmra.mxu0 %v241
    %v260 = vpop.f32.mrf.mxu0
    %v261 = vadd.f32 0.0, %v260
    %262 = vdwg.mxu0
    %263 = vmatpush.msra.mxu0 0.0
    %264 = vmatpush.msra.mxu0 0.0
    %265 = vmatpush.msra.mxu0 0.0
    %266 = vmatpush.msra.mxu0 0.0
    %267 = vmatpush.msra.mxu0 0.0
    %268 = vmatpush.msra.mxu0 0.0
    %269 = vmatpush.msra.mxu0 0.0
    %270 = vmatpush.msra.mxu0 0.0
    %271 = vmatpush.msra.mxu0 0.0
    %272 = vmatpush.msra.mxu0 0.0
    %273 = vmatpush.msra.mxu0 0.0
    %274 = vmatpush.msra.mxu0 0.0
    %275 = vmatpush.msra.mxu0 %v166
    %276 = vmatpush.msra.mxu0 %v164
    %277 = vmatpush.msra.mxu0 %v162
    %278 = vmatpush.msra.mxu0 %v160
    %279 = vmatmul.f32.gmra.mxu0 %v241
    %v280 = vpop.f32.mrf.mxu0
    %v281 = vadd.f32 0.0, %v280
    %282 = vdwg.mxu0
    %v283 = vsel %vm169, %v261, %v281
    %v285 = vrot.slane %v154, 2
    %v287 = vadd.f32 %v283, %v285
    %v288 = vmul.f32 %v287, 0.5
    %v289 = vtanh.pop %v288
    %v290 = vadd.f32 %v289, 1.0
    %v291 = vmul.f32 %v290, 0.5
    %v292 = vtanh.pop %v287
    %v293 = vmul.f32 %v291, %v231
    %295 = vrot.lane.b32.xlu0 %v292, 64
    %v296 = vpop.permute.xlu0 %295
    %v298 = vmul.f32 %v291, %v296
    %300 = vrot.lane.b32.xlu0 %v298, 32
    %v301 = vpop.permute.xlu0 %300
    %v303 = vadd.f32 %v293, %v301
    %v304 = vtanh.pop %v303
    %306 = vrot.lane.b32.xlu0 %v304, 64
    %v307 = vpop.permute.xlu0 %306
    %v309 = vmul.f32 %v291, %v307
    %311 = vrot.lane.b32.xlu0 %v309, 32
    %v312 = vpop.permute.xlu0 %311
    %v313 = vsel %vm170, %v312, 0
    %315 = vmatpush.msra.mxu0 0.0
    %316 = vmatpush.msra.mxu0 0.0
    %317 = vmatpush.msra.mxu0 0.0
    %318 = vmatpush.msra.mxu0 0.0
    %319 = vmatpush.msra.mxu0 0.0
    %320 = vmatpush.msra.mxu0 0.0
    %321 = vmatpush.msra.mxu0 0.0
    %322 = vmatpush.msra.mxu0 0.0
    %323 = vmatpush.msra.mxu0 0.0
    %324 = vmatpush.msra.mxu0 0.0
    %325 = vmatpush.msra.mxu0 0.0
    %326 = vmatpush.msra.mxu0 0.0
    %327 = vmatpush.msra.mxu0 %v165
    %328 = vmatpush.msra.mxu0 %v163
    %329 = vmatpush.msra.mxu0 %v161
    %330 = vmatpush.msra.mxu0 %v159
    %331 = vmatmul.f32.gmra.mxu0 %v313
    %v332 = vpop.f32.mrf.mxu0
    %v333 = vadd.f32 0.0, %v332
    %334 = vdwg.mxu0
    %335 = vmatpush.msra.mxu0 0.0
    %336 = vmatpush.msra.mxu0 0.0
    %337 = vmatpush.msra.mxu0 0.0
    %338 = vmatpush.msra.mxu0 0.0
    %339 = vmatpush.msra.mxu0 0.0
    %340 = vmatpush.msra.mxu0 0.0
    %341 = vmatpush.msra.mxu0 0.0
    %342 = vmatpush.msra.mxu0 0.0
    %343 = vmatpush.msra.mxu0 0.0
    %344 = vmatpush.msra.mxu0 0.0
    %345 = vmatpush.msra.mxu0 0.0
    %346 = vmatpush.msra.mxu0 0.0
    %347 = vmatpush.msra.mxu0 %v166
    %348 = vmatpush.msra.mxu0 %v164
    %349 = vmatpush.msra.mxu0 %v162
    %350 = vmatpush.msra.mxu0 %v160
    %351 = vmatmul.f32.gmra.mxu0 %v313
    %v352 = vpop.f32.mrf.mxu0
    %v353 = vadd.f32 0.0, %v352
    %354 = vdwg.mxu0
    %v355 = vsel %vm169, %v333, %v353
    %v356 = vrot.slane %v154, 4
    %v358 = vadd.f32 %v355, %v356
    %v359 = vmul.f32 %v358, 0.5
    %v360 = vtanh.pop %v359
    %v361 = vadd.f32 %v360, 1.0
    %v362 = vmul.f32 %v361, 0.5
    %v363 = vtanh.pop %v358
    %v364 = vmul.f32 %v362, %v303
    %366 = vrot.lane.b32.xlu0 %v363, 64
    %v367 = vpop.permute.xlu0 %366
    %v369 = vmul.f32 %v362, %v367
    %371 = vrot.lane.b32.xlu0 %v369, 32
    %v372 = vpop.permute.xlu0 %371
    %v374 = vadd.f32 %v364, %v372
    %v375 = vtanh.pop %v374
    %377 = vrot.lane.b32.xlu0 %v375, 64
    %v378 = vpop.permute.xlu0 %377
    %v380 = vmul.f32 %v362, %v378
    %382 = vrot.lane.b32.xlu0 %v380, 32
    %v383 = vpop.permute.xlu0 %382
    %v384 = vsel %vm170, %v383, 0
    %386 = vmatpush.msra.mxu0 0.0
    %387 = vmatpush.msra.mxu0 0.0
    %388 = vmatpush.msra.mxu0 0.0
    %389 = vmatpush.msra.mxu0 0.0
    %390 = vmatpush.msra.mxu0 0.0
    %391 = vmatpush.msra.mxu0 0.0
    %392 = vmatpush.msra.mxu0 0.0
    %393 = vmatpush.msra.mxu0 0.0
    %394 = vmatpush.msra.mxu0 0.0
    %395 = vmatpush.msra.mxu0 0.0
    %396 = vmatpush.msra.mxu0 0.0
    %397 = vmatpush.msra.mxu0 0.0
    %398 = vmatpush.msra.mxu0 %v165
    %399 = vmatpush.msra.mxu0 %v163
    %400 = vmatpush.msra.mxu0 %v161
    %401 = vmatpush.msra.mxu0 %v159
    %402 = vmatmul.f32.gmra.mxu0 %v384
    %v403 = vpop.f32.mrf.mxu0
    %v404 = vadd.f32 0.0, %v403
    %405 = vdwg.mxu0
    %406 = vmatpush.msra.mxu0 0.0
    %407 = vmatpush.msra.mxu0 0.0
    %408 = vmatpush.msra.mxu0 0.0
    %409 = vmatpush.msra.mxu0 0.0
    %410 = vmatpush.msra.mxu0 0.0
    %411 = vmatpush.msra.mxu0 0.0
    %412 = vmatpush.msra.mxu0 0.0
    %413 = vmatpush.msra.mxu0 0.0
    %414 = vmatpush.msra.mxu0 0.0
    %415 = vmatpush.msra.mxu0 0.0
    %416 = vmatpush.msra.mxu0 0.0
    %417 = vmatpush.msra.mxu0 0.0
    %418 = vmatpush.msra.mxu0 %v166
    %419 = vmatpush.msra.mxu0 %v164
    %420 = vmatpush.msra.mxu0 %v162
    %421 = vmatpush.msra.mxu0 %v160
    %422 = vmatmul.f32.gmra.mxu0 %v384
    %v423 = vpop.f32.mrf.mxu0
    %v424 = vadd.f32 0.0, %v423
    %425 = vdwg.mxu0
    %v426 = vsel %vm169, %v404, %v424
    %v427 = vrot.slane %v154, 6
    %v429 = vadd.f32 %v426, %v427
    %v430 = vmul.f32 %v429, 0.5
    %v431 = vtanh.pop %v430
    %v432 = vadd.f32 %v431, 1.0
    %v433 = vmul.f32 %v432, 0.5
    %v434 = vtanh.pop %v429
    %v435 = vmul.f32 %v433, %v374
    %437 = vrot.lane.b32.xlu0 %v434, 64
    %v438 = vpop.permute.xlu0 %437
    %v440 = vmul.f32 %v433, %v438
    %442 = vrot.lane.b32.xlu0 %v440, 32
    %v443 = vpop.permute.xlu0 %442
    %v445 = vadd.f32 %v435, %v443
    %v446 = vtanh.pop %v445
    %448 = vrot.lane.b32.xlu0 %v446, 64
    %v449 = vpop.permute.xlu0 %448
    %v451 = vmul.f32 %v433, %v449
    %453 = vrot.lane.b32.xlu0 %v451, 32
    %v454 = vpop.permute.xlu0 %453
    %v455 = vsel %vm170, %v454, 0
    %457 = vmatpush.msra.mxu0 0.0
    %458 = vmatpush.msra.mxu0 0.0
    %459 = vmatpush.msra.mxu0 0.0
    %460 = vmatpush.msra.mxu0 0.0
    %461 = vmatpush.msra.mxu0 0.0
    %462 = vmatpush.msra.mxu0 0.0
    %463 = vmatpush.msra.mxu0 0.0
    %464 = vmatpush.msra.mxu0 0.0
    %465 = vmatpush.msra.mxu0 0.0
    %466 = vmatpush.msra.mxu0 0.0
    %467 = vmatpush.msra.mxu0 0.0
    %468 = vmatpush.msra.mxu0 0.0
    %469 = vmatpush.msra.mxu0 %v165
    %470 = vmatpush.msra.mxu0 %v163
    %471 = vmatpush.msra.mxu0 %v161
    %472 = vmatpush.msra.mxu0 %v159
    %473 = vmatmul.f32.gmra.mxu0 %v455
    %v474 = vpop.f32.mrf.mxu0
    %v475 = vadd.f32 0.0, %v474
    %476 = vdwg.mxu0
    %477 = vmatpush.msra.mxu0 0.0
    %478 = vmatpush.msra.mxu0 0.0
    %479 = vmatpush.msra.mxu0 0.0
    %480 = vmatpush.msra.mxu0 0.0
    %481 = vmatpush.msra.mxu0 0.0
    %482 = vmatpush.msra.mxu0 0.0
    %483 = vmatpush.msra.mxu0 0.0
    %484 = vmatpush.msra.mxu0 0.0
    %485 = vmatpush.msra.mxu0 0.0
    %486 = vmatpush.msra.mxu0 0.0
    %487 = vmatpush.msra.mxu0 0.0
    %488 = vmatpush.msra.mxu0 0.0
    %489 = vmatpush.msra.mxu0 %v166
    %490 = vmatpush.msra.mxu0 %v164
    %491 = vmatpush.msra.mxu0 %v162
    %492 = vmatpush.msra.mxu0 %v160
    %493 = vmatmul.f32.gmra.mxu0 %v455
    %v494 = vpop.f32.mrf.mxu0
    %v495 = vadd.f32 0.0, %v494
    %496 = vdwg.mxu0
    %v497 = vsel %vm169, %v475, %v495
    %v498 = vadd.f32 %v497, %v157
    %v499 = vmul.f32 %v498, 0.5
    %v500 = vtanh.pop %v499
    %v501 = vadd.f32 %v500, 1.0
    %v502 = vmul.f32 %v501, 0.5
    %v503 = vtanh.pop %v498
    %v504 = vmul.f32 %v502, %v445
    %506 = vrot.lane.b32.xlu0 %v503, 64
    %v507 = vpop.permute.xlu0 %506
    %v509 = vmul.f32 %v502, %v507
    %511 = vrot.lane.b32.xlu0 %v509, 32
    %v512 = vpop.permute.xlu0 %511
    %v514 = vadd.f32 %v504, %v512
    %v515 = vtanh.pop %v514
    %517 = vrot.lane.b32.xlu0 %v515, 64
    %v518 = vpop.permute.xlu0 %517
    %v520 = vmul.f32 %v502, %v518
    %522 = vrot.lane.b32.xlu0 %v520, 32
    %v523 = vpop.permute.xlu0 %522
    %v524 = vsel %vm170, %v523, 0
    %526 = vmatpush.msra.mxu0 0.0
    %527 = vmatpush.msra.mxu0 0.0
    %528 = vmatpush.msra.mxu0 0.0
    %529 = vmatpush.msra.mxu0 0.0
    %530 = vmatpush.msra.mxu0 0.0
    %531 = vmatpush.msra.mxu0 0.0
    %532 = vmatpush.msra.mxu0 0.0
    %533 = vmatpush.msra.mxu0 0.0
    %534 = vmatpush.msra.mxu0 0.0
    %535 = vmatpush.msra.mxu0 0.0
    %536 = vmatpush.msra.mxu0 0.0
    %537 = vmatpush.msra.mxu0 0.0
    %538 = vmatpush.msra.mxu0 %v165
    %539 = vmatpush.msra.mxu0 %v163
    %540 = vmatpush.msra.mxu0 %v161
    %541 = vmatpush.msra.mxu0 %v159
    %542 = vmatmul.f32.gmra.mxu0 %v524
    %v543 = vpop.f32.mrf.mxu0
    %v544 = vadd.f32 0.0, %v543
    %545 = vdwg.mxu0
    %546 = vmatpush.msra.mxu0 0.0
    %547 = vmatpush.msra.mxu0 0.0
    %548 = vmatpush.msra.mxu0 0.0
    %549 = vmatpush.msra.mxu0 0.0
    %550 = vmatpush.msra.mxu0 0.0
    %551 = vmatpush.msra.mxu0 0.0
    %552 = vmatpush.msra.mxu0 0.0
    %553 = vmatpush.msra.mxu0 0.0
    %554 = vmatpush.msra.mxu0 0.0
    %555 = vmatpush.msra.mxu0 0.0
    %556 = vmatpush.msra.mxu0 0.0
    %557 = vmatpush.msra.mxu0 0.0
    %558 = vmatpush.msra.mxu0 %v166
    %559 = vmatpush.msra.mxu0 %v164
    %560 = vmatpush.msra.mxu0 %v162
    %561 = vmatpush.msra.mxu0 %v160
    %562 = vmatmul.f32.gmra.mxu0 %v524
    %v563 = vpop.f32.mrf.mxu0
    %v564 = vadd.f32 0.0, %v563
    %565 = vdwg.mxu0
    %v566 = vsel %vm169, %v544, %v564
    %v568 = vrot.slane %v157, 2
    %v570 = vadd.f32 %v566, %v568
    %v571 = vmul.f32 %v570, 0.5
    %v572 = vtanh.pop %v571
    %v573 = vadd.f32 %v572, 1.0
    %v574 = vmul.f32 %v573, 0.5
    %v575 = vtanh.pop %v570
    %v576 = vmul.f32 %v574, %v514
    %578 = vrot.lane.b32.xlu0 %v575, 64
    %v579 = vpop.permute.xlu0 %578
    %v581 = vmul.f32 %v574, %v579
    %583 = vrot.lane.b32.xlu0 %v581, 32
    %v584 = vpop.permute.xlu0 %583
    %v586 = vadd.f32 %v576, %v584
    %v587 = vtanh.pop %v586
    %589 = vrot.lane.b32.xlu0 %v587, 64
    %v590 = vpop.permute.xlu0 %589
    %v592 = vmul.f32 %v574, %v590
    %594 = vrot.lane.b32.xlu0 %v592, 32
    %v595 = vpop.permute.xlu0 %594
    %v596 = vsel %vm170, %v595, 0
    %598 = vmatpush.msra.mxu0 0.0
    %599 = vmatpush.msra.mxu0 0.0
    %600 = vmatpush.msra.mxu0 0.0
    %601 = vmatpush.msra.mxu0 0.0
    %602 = vmatpush.msra.mxu0 0.0
    %603 = vmatpush.msra.mxu0 0.0
    %604 = vmatpush.msra.mxu0 0.0
    %605 = vmatpush.msra.mxu0 0.0
    %606 = vmatpush.msra.mxu0 0.0
    %607 = vmatpush.msra.mxu0 0.0
    %608 = vmatpush.msra.mxu0 0.0
    %609 = vmatpush.msra.mxu0 0.0
    %610 = vmatpush.msra.mxu0 %v165
    %611 = vmatpush.msra.mxu0 %v163
    %612 = vmatpush.msra.mxu0 %v161
    %613 = vmatpush.msra.mxu0 %v159
    %614 = vmatmul.f32.gmra.mxu0 %v596
    %v615 = vpop.f32.mrf.mxu0
    %v616 = vadd.f32 0.0, %v615
    %617 = vdwg.mxu0
    %618 = vmatpush.msra.mxu0 0.0
    %619 = vmatpush.msra.mxu0 0.0
    %620 = vmatpush.msra.mxu0 0.0
    %621 = vmatpush.msra.mxu0 0.0
    %622 = vmatpush.msra.mxu0 0.0
    %623 = vmatpush.msra.mxu0 0.0
    %624 = vmatpush.msra.mxu0 0.0
    %625 = vmatpush.msra.mxu0 0.0
    %626 = vmatpush.msra.mxu0 0.0
    %627 = vmatpush.msra.mxu0 0.0
    %628 = vmatpush.msra.mxu0 0.0
    %629 = vmatpush.msra.mxu0 0.0
    %630 = vmatpush.msra.mxu0 %v166
    %631 = vmatpush.msra.mxu0 %v164
    %632 = vmatpush.msra.mxu0 %v162
    %633 = vmatpush.msra.mxu0 %v160
    %634 = vmatmul.f32.gmra.mxu0 %v596
    %v635 = vpop.f32.mrf.mxu0
    %v636 = vadd.f32 0.0, %v635
    %637 = vdwg.mxu0
    %v638 = vsel %vm169, %v616, %v636
    %v639 = vrot.slane %v157, 4
    %v641 = vadd.f32 %v638, %v639
    %v642 = vmul.f32 %v641, 0.5
    %v643 = vtanh.pop %v642
    %v644 = vadd.f32 %v643, 1.0
    %v645 = vmul.f32 %v644, 0.5
    %v646 = vtanh.pop %v641
    %v647 = vmul.f32 %v645, %v586
    %649 = vrot.lane.b32.xlu0 %v646, 64
    %v650 = vpop.permute.xlu0 %649
    %v652 = vmul.f32 %v645, %v650
    %654 = vrot.lane.b32.xlu0 %v652, 32
    %v655 = vpop.permute.xlu0 %654
    %v657 = vadd.f32 %v647, %v655
    %v658 = vtanh.pop %v657
    %660 = vrot.lane.b32.xlu0 %v658, 64
    %v661 = vpop.permute.xlu0 %660
    %v663 = vmul.f32 %v645, %v661
    %665 = vrot.lane.b32.xlu0 %v663, 32
    %v666 = vpop.permute.xlu0 %665
    %v667 = vsel %vm170, %v666, 0
    %669 = vmatpush.msra.mxu0 0.0
    %670 = vmatpush.msra.mxu0 0.0
    %671 = vmatpush.msra.mxu0 0.0
    %672 = vmatpush.msra.mxu0 0.0
    %673 = vmatpush.msra.mxu0 0.0
    %674 = vmatpush.msra.mxu0 0.0
    %675 = vmatpush.msra.mxu0 0.0
    %676 = vmatpush.msra.mxu0 0.0
    %677 = vmatpush.msra.mxu0 0.0
    %678 = vmatpush.msra.mxu0 0.0
    %679 = vmatpush.msra.mxu0 0.0
    %680 = vmatpush.msra.mxu0 0.0
    %681 = vmatpush.msra.mxu0 %v165
    %682 = vmatpush.msra.mxu0 %v163
    %683 = vmatpush.msra.mxu0 %v161
    %684 = vmatpush.msra.mxu0 %v159
    %685 = vmatmul.f32.gmra.mxu0 %v667
    %v686 = vpop.f32.mrf.mxu0
    %v687 = vadd.f32 0.0, %v686
    %688 = vdwg.mxu0
    %689 = vmatpush.msra.mxu0 0.0
    %690 = vmatpush.msra.mxu0 0.0
    %691 = vmatpush.msra.mxu0 0.0
    %692 = vmatpush.msra.mxu0 0.0
    %693 = vmatpush.msra.mxu0 0.0
    %694 = vmatpush.msra.mxu0 0.0
    %695 = vmatpush.msra.mxu0 0.0
    %696 = vmatpush.msra.mxu0 0.0
    %697 = vmatpush.msra.mxu0 0.0
    %698 = vmatpush.msra.mxu0 0.0
    %699 = vmatpush.msra.mxu0 0.0
    %700 = vmatpush.msra.mxu0 0.0
    %701 = vmatpush.msra.mxu0 %v166
    %702 = vmatpush.msra.mxu0 %v164
    %703 = vmatpush.msra.mxu0 %v162
    %704 = vmatpush.msra.mxu0 %v160
    %705 = vmatmul.f32.gmra.mxu0 %v667
    %v706 = vpop.f32.mrf.mxu0
    %v707 = vadd.f32 0.0, %v706
    %708 = vdwg.mxu0
    %v709 = vsel %vm169, %v687, %v707
    %v710 = vrot.slane %v157, 6
    %v712 = vadd.f32 %v709, %v710
    %v713 = vmul.f32 %v712, 0.5
    %v714 = vtanh.pop %v713
    %v715 = vadd.f32 %v714, 1.0
    %v716 = vmul.f32 %v715, 0.5
    %v717 = vtanh.pop %v712
    %v718 = vmul.f32 %v716, %v657
    %720 = vrot.lane.b32.xlu0 %v717, 64
    %v721 = vpop.permute.xlu0 %720
    %v723 = vmul.f32 %v716, %v721
    %725 = vrot.lane.b32.xlu0 %v723, 32
    %v726 = vpop.permute.xlu0 %725
    %v728 = vadd.f32 %v718, %v726
    %v729 = vtanh.pop %v728
    %731 = vrot.lane.b32.xlu0 %v729, 64
    %v732 = vpop.permute.xlu0 %731
    %v734 = vmul.f32 %v716, %v732
    %v735 = vrot.slane %v309, 7
    %v737 = vrot.slane %v380, 6
    %v739 = vrot.slane %v451, 5
    %v741 = vrot.slane %v520, 4
    %v743 = vrot.slane %v592, 3
    %v745 = vrot.slane %v663, 2
    %v748 = vrot.slane %v734, 1
    %vm750 = vcmask 1040384
    %v751 = vsel %vm750, %v237, %v735
    %v752 = vsel %vm132, %v751, %v737
    %vm753 = vcmask 1042432
    %v754 = vsel %vm753, %v752, %v739
    %vm755 = vcmask 1043456
    %v756 = vsel %vm755, %v754, %v741
    %vm757 = vcmask 1044480
    %v758 = vsel %vm757, %v756, %v743
    %vm759 = vcmask 1045504
    %v760 = vsel %vm759, %v758, %v745
    %vm761 = vcmask 1046528
    %v762 = vsel %vm761, %v760, %v748
    %v763 = vrot.slane %v592, 7
    %v765 = vrot.slane %v520, 6
    %v767 = vrot.slane %v380, 4
    %v769 = vrot.slane %v309, 3
    %v771 = vrot.slane %v237, 2
    %v773 = vsel %vm750, %v748, %v663
    %v774 = vsel %vm132, %v773, %v763
    %v775 = vsel %vm753, %v774, %v765
    %v776 = vsel %vm755, %v775, %v739
    %v777 = vsel %vm757, %v776, %v767
    %v778 = vsel %vm759, %v777, %v769
    %v779 = vsel %vm761, %v778, %v771
    %781 = vrot.lane.b32.xlu0 %v762, 32
    %v782 = vpop.permute.xlu0 %781
    %785 = vrot.lane.b32.xlu0 %v779, 64
    %v786 = vpop.permute.xlu0 %785
    %v788 = vsel %vm170, %v782, %v786
    %v789 = vld [vmem:[%s3] sm:$0xff]
    %v790 = vld [vmem:[%s3 + $0x8] sm:$0xff]
    %v791 = vld [vmem:[%s3 + $0x10] sm:$0xff]
    %v792 = vld [vmem:[%s3 + $0x18] sm:$0xff]
    %v793 = vld [vmem:[%s3 + $0x20] sm:$0xff]
    %v794 = vld [vmem:[%s3 + $0x28] sm:$0xff]
    %v795 = vld [vmem:[%s3 + $0x30] sm:$0xff]
    %v796 = vld [vmem:[%s3 + $0x38] sm:$0xff]
    %v797 = vld [vmem:[%s4] sm:$0x1]
    %v799 = vperm.slane %v797, 0
    %vm801 = vcmask 523264
    %v803 = vsel %vm801, %v788, 0
    %805 = vmatpush.msra.mxu0 0.0
    %806 = vmatpush.msra.mxu0 0.0
    %807 = vmatpush.msra.mxu0 0.0
    %808 = vmatpush.msra.mxu0 0.0
    %809 = vmatpush.msra.mxu0 0.0
    %810 = vmatpush.msra.mxu0 0.0
    %811 = vmatpush.msra.mxu0 0.0
    %812 = vmatpush.msra.mxu0 0.0
    %813 = vmatpush.msra.mxu0 %v796
    %814 = vmatpush.msra.mxu0 %v795
    %815 = vmatpush.msra.mxu0 %v794
    %816 = vmatpush.msra.mxu0 %v793
    %817 = vmatpush.msra.mxu0 %v792
    %818 = vmatpush.msra.mxu0 %v791
    %819 = vmatpush.msra.mxu0 %v790
    %820 = vmatpush.msra.mxu0 %v789
    %821 = vmatmul.f32.gmra.mxu0 %v803
    %v822 = vpop.f32.mrf.mxu0
    %v823 = vadd.f32 %v799, %v822
    %824 = vdwg.mxu0
    %v825 = vld [vmem:[%s5] sm:$0xff]
    %v826 = vld [vmem:[%s5 + $0x8] sm:$0xff]
    %v827 = vld [vmem:[%s5 + $0x10] sm:$0xff]
    %v828 = vld [vmem:[%s5 + $0x18] sm:$0xff]
    %v829 = vld [vmem:[#allocation7] sm:$0x1]
    %v831 = vperm.slane %v829, 0
    %v834 = vsel %vm170, %v823, 0
    %836 = vmatpush.msra.mxu0 0.0
    %837 = vmatpush.msra.mxu0 0.0
    %838 = vmatpush.msra.mxu0 0.0
    %839 = vmatpush.msra.mxu0 0.0
    %840 = vmatpush.msra.mxu0 0.0
    %841 = vmatpush.msra.mxu0 0.0
    %842 = vmatpush.msra.mxu0 0.0
    %843 = vmatpush.msra.mxu0 0.0
    %844 = vmatpush.msra.mxu0 0.0
    %845 = vmatpush.msra.mxu0 0.0
    %846 = vmatpush.msra.mxu0 0.0
    %847 = vmatpush.msra.mxu0 0.0
    %848 = vmatpush.msra.mxu0 %v828
    %849 = vmatpush.msra.mxu0 %v827
    %850 = vmatpush.msra.mxu0 %v826
    %851 = vmatpush.msra.mxu0 %v825
    %852 = vmatmul.f32.gmra.mxu0 %v834
    %v853 = vpop.f32.mrf.mxu0
    %v854 = vadd.f32 %v831, %v853
    %855 = vdwg.mxu0
    %v856 = vld [vmem:[#allocation10] sm:$0xff]
    %v857 = vld [vmem:[#allocation10 + $0x8] sm:$0xff]
    %v858 = vld [vmem:[#allocation10 + $0x10] sm:$0xff]
    %v859 = vld [vmem:[#allocation10 + $0x18] sm:$0xff]
    %v860 = vmul.f32 %v854, %v856
    %v861 = vmul.f32 %v854, %v857
    %v862 = vmul.f32 %v854, %v858
    %v863 = vmul.f32 %v854, %v859
    %865 = vrot.lane.b32.xlu0 %v854, 96
    %v866 = vpop.permute.xlu0 %865
    %v868 = vsel %vm170, %v860, 0
    %v871 = vsel %vm170, %v861, 0
    %v874 = vsel %vm170, %v862, 0
    %v877 = vsel %vm170, %v863, 0
    %v879 = vsel %vm170, %v866, 0
    %881 = vmatpush.xpose.msra.mxu0 0.0
    %882 = vmatpush.xpose.msra.mxu0 0.0
    %883 = vmatpush.xpose.msra.mxu0 0.0
    %884 = vmatpush.xpose.msra.mxu0 0.0
    %885 = vmatpush.xpose.msra.mxu0 0.0
    %886 = vmatpush.xpose.msra.mxu0 0.0
    %887 = vmatpush.xpose.msra.mxu0 0.0
    %888 = vmatpush.xpose.msra.mxu0 0.0
    %889 = vmatpush.xpose.msra.mxu0 0.0
    %890 = vmatpush.xpose.msra.mxu0 0.0
    %891 = vmatpush.xpose.msra.mxu0 0.0
    %892 = vmatpush.xpose.msra.mxu0 0.0
    %893 = vmatpush.xpose.msra.mxu0 0.0
    %894 = vmatpush.xpose.msra.mxu0 0.0
    %895 = vmatpush.xpose.msra.mxu0 0.0
    %896 = vmatpush.xpose.msra.mxu0 %v879
    %897 = vmatmul.f32.gmra.mxu0 %v868
    %v898 = vpop.f32.mrf.mxu0
    %v899 = vadd.f32 0.0, %v898
    %900 = vmatmul.f32.gmra.mxu0 %v871
    %v901 = vpop.f32.mrf.mxu0
    %v902 = vadd.f32 0.0, %v901
    %903 = vmatmul.f32.gmra.mxu0 %v874
    %v904 = vpop.f32.mrf.mxu0
    %v905 = vadd.f32 0.0, %v904
    %906 = vmatmul.f32.gmra.mxu0 %v877
    %v907 = vpop.f32.mrf.mxu0
    %v908 = vadd.f32 0.0, %v907
    %909 = vdwg.mxu0
    %vm910 = vcmask 64512
    %v911 = vsel %vm910, %v899, -inf
    %912 = vmax.xlane.f32.xlu0 %v911
    %v913 = vpop.xlane.xlu0 %912
    %v914 = vsel %vm910, %v902, -inf
    %915 = vmax.xlane.f32.xlu0 %v914
    %v916 = vpop.xlane.xlu0 %915
    %v917 = vsel %vm910, %v905, -inf
    %918 = vmax.xlane.f32.xlu0 %v917
    %v919 = vpop.xlane.xlu0 %918
    %v920 = vsel %vm910, %v908, -inf
    %921 = vmax.xlane.f32.xlu0 %v920
    %v922 = vpop.xlane.xlu0 %921
    %v923 = vsub.f32 %v899, %v913
    %v924 = vsub.f32 %v902, %v916
    %v925 = vsub.f32 %v905, %v919
    %v926 = vsub.f32 %v908, %v922
    %v927 = vmul.f32 %v923, 1.442695
    %v928 = vpow.pop %v927
    %v929 = vmul.f32 %v924, 1.442695
    %v930 = vpow.pop %v929
    %v931 = vmul.f32 %v925, 1.442695
    %v932 = vpow.pop %v931
    %v933 = vmul.f32 %v926, 1.442695
    %v934 = vpow.pop %v933
    %v935 = vsel %vm910, %v928, 0.0
    %936 = vadd.xlane.f32.xlu0 %v935
    %v937 = vpop.xlane.xlu0 %936
    %v938 = vsel %vm910, %v930, 0.0
    %939 = vadd.xlane.f32.xlu0 %v938
    %v940 = vpop.xlane.xlu0 %939
    %v941 = vsel %vm910, %v932, 0.0
    %942 = vadd.xlane.f32.xlu0 %v941
    %v943 = vpop.xlane.xlu0 %942
    %v944 = vsel %vm910, %v934, 0.0
    %945 = vadd.xlane.f32.xlu0 %v944
    %v946 = vpop.xlane.xlu0 %945
    %v947 = vrcp.pop %v937
    %v948 = vrcp.pop %v940
    %v949 = vrcp.pop %v943
    %v950 = vrcp.pop %v946
    %v951 = vmul.f32 %v937, %v947
    %v952 = vmul.f32 %v940, %v948
    %v953 = vmul.f32 %v943, %v949
    %v954 = vmul.f32 %v946, %v950
    %v955 = vsub.f32 2.0, %v951
    %v956 = vsub.f32 2.0, %v952
    %v957 = vsub.f32 2.0, %v953
    %v958 = vsub.f32 2.0, %v954
    %v959 = vmul.f32 %v947, %v955
    %v960 = vmul.f32 %v948, %v956
    %v961 = vmul.f32 %v949, %v957
    %v962 = vmul.f32 %v950, %v958
    %v963 = vmul.f32 %v928, %v959
    %v964 = vmul.f32 %v930, %v960
    %v965 = vmul.f32 %v932, %v961
    %v966 = vmul.f32 %v934, %v962
    %v967 = vadd.f32 %v963, %v964
    %v968 = vadd.f32 %v967, %v965
    %v969 = vadd.f32 %v968, %v966
    %v970 = vmul.f32 %v969, 0.25
    %971 = vst.msk [vmem:[#allocation12] sm:$0xff] %vm910, %v970
    %v973 = vrot.slane %v963, 7
    %v976 = vrot.slane %v964, 6
    %v979 = vrot.slane %v965, 5
    %v982 = vrot.slane %v966, 4
    %v984 = vsel %vm750, %v973, %v976
    %v985 = vsel %vm132, %v984, %v979
    %v986 = vsel %vm753, %v985, %v982
    %987 = vrot.lane.b32.xlu0 %v854, 64
    %v988 = vpop.permute.xlu0 %987
    %v991 = vsel %vm910, %v986, 0
    %993 = vmatpush.msra.mxu0 0.0
    %994 = vmatpush.msra.mxu0 0.0
    %995 = vmatpush.msra.mxu0 0.0
    %996 = vmatpush.msra.mxu0 0.0
    %997 = vmatpush.msra.mxu0 0.0
    %998 = vmatpush.msra.mxu0 0.0
    %999 = vmatpush.msra.mxu0 0.0
    %1000 = vmatpush.msra.mxu0 0.0
    %1001 = vmatpush.msra.mxu0 0.0
    %1002 = vmatpush.msra.mxu0 0.0
    %1003 = vmatpush.msra.mxu0 0.0
    %1004 = vmatpush.msra.mxu0 0.0
    %1005 = vmatpush.msra.mxu0 0.0
    %1006 = vmatpush.msra.mxu0 0.0
    %1007 = vmatpush.msra.mxu0 0.0
    %1008 = vmatpush.msra.mxu0 %v988
    %1009 = vmatmul.f32.gmra.mxu0 %v991
    %v1010 = vpop.f32.mrf.mxu0
    %v1011 = vadd.f32 0.0, %v1010
    %1012 = vdwg.mxu0
    %v1013 = vld [vmem:[%s10] sm:$0xf]
    %v1014 = vmul.f32 %v1011, %v1013
    %vm1015 = vcmask 257024
    %v1016 = vsel %vm1015, %v1014, 0.0
    %v1017 = vrot.slane %v1016, 4
    %v1018 = vadd.f32 %v1016, %v1017
    %v1019 = vrot.slane %v1018, 2
    %v1020 = vadd.f32 %v1018, %v1019
    %v1021 = vrot.slane %v1020, 1
    %v1022 = vadd.f32 %v1020, %v1021
    %v1023 = vld [vmem:[#allocation8] sm:$0xff]
    %v1024 = vld [vmem:[#allocation8 + $0x8] sm:$0xff]
    %v1025 = vld [vmem:[#allocation8 + $0x10] sm:$0xff]
    %v1026 = vld [vmem:[#allocation8 + $0x18] sm:$0xff]
    %v1027 = vld [vmem:[%s8] sm:$0x1]
    %v1029 = vsel %vm170, %v1022, 0
    %1031 = vmatpush.msra.mxu0 0.0
    %1032 = vmatpush.msra.mxu0 0.0
    %1033 = vmatpush.msra.mxu0 0.0
    %1034 = vmatpush.msra.mxu0 0.0
    %1035 = vmatpush.msra.mxu0 0.0
    %1036 = vmatpush.msra.mxu0 0.0
    %1037 = vmatpush.msra.mxu0 0.0
    %1038 = vmatpush.msra.mxu0 0.0
    %1039 = vmatpush.msra.mxu0 0.0
    %1040 = vmatpush.msra.mxu0 0.0
    %1041 = vmatpush.msra.mxu0 0.0
    %1042 = vmatpush.msra.mxu0 0.0
    %1043 = vmatpush.msra.mxu0 %v1026
    %1044 = vmatpush.msra.mxu0 %v1025
    %1045 = vmatpush.msra.mxu0 %v1024
    %1046 = vmatpush.msra.mxu0 %v1023
    %1047 = vmatmul.f32.gmra.mxu0 %v1029
    %v1048 = vpop.f32.mrf.mxu0
    %v1049 = vadd.f32 %v1027, %v1048
    %1050 = vdwg.mxu0
    %vm1051 = vcmask 253952
    %1052 = vst.msk [vmem:[#allocation11] sm:$0x1] %vm1051, %v1049
    // Predicated region
    $region66: #{tpu_custom_call.1} parent=1 // pred_check
      _
    $region67: #{tpu_custom_call.1} parent=1 // pred_check_branch
      %1054 = sbr.rel (0) target = $region69
    $region68: #{tpu_custom_call.1} parent=1 // pred_region
      %1056 = vsyncadd [#allocation4], 0
      %s1058 = sshll.u32 [#allocation11], 4
      %s1059 = int_to_ptr.vmem [resolvable:$true] %s1058
      %s1060 = sshll.u32 %s11, 4
      %s1061 = int_to_ptr.hbm [resolvable:$true] %s1060
      %1063 = dma.vmem_to_hbm [thread:$0]  %s1059, 16, %s1061, [#allocation4]
    $region69: #{tpu_custom_call.1} parent=1 // pred_fallthru
      _
    // Predicated region
    $region70: #{tpu_custom_call.1} parent=1 // pred_check
      _
    $region71: #{tpu_custom_call.1} parent=1 // pred_check_branch
      %1065 = sbr.rel (0) target = $region73
    $region72: #{tpu_custom_call.1} parent=1 // pred_region
      %1067 = vsyncadd [#allocation13], 0
      %s1069 = sshll.u32 [#allocation12], 4
      %s1070 = int_to_ptr.vmem [resolvable:$true] %s1069
      %s1071 = sshll.u32 %s12, 4
      %s1072 = int_to_ptr.hbm [resolvable:$true] %s1071
      %1074 = dma.vmem_to_hbm [thread:$0]  %s1070, 128, %s1072, [#allocation13]
    $region73: #{tpu_custom_call.1} parent=1 // pred_fallthru
      _
    // Predicated region
    $region74: #{tpu_custom_call.1} parent=1 // pred_check
      _
    $region75: #{tpu_custom_call.1} parent=1 // pred_check_branch
      %1076 = sbr.rel (0) target = $region77
    $region76: #{tpu_custom_call.1} parent=1 // pred_region
      %1078 = dma.done [#allocation4], 16
    $region77: #{tpu_custom_call.1} parent=1 // pred_fallthru
      _
    // Predicated region
    $region78: #{tpu_custom_call.1} parent=1 // pred_check
      _
    $region79: #{tpu_custom_call.1} parent=1 // pred_check_branch
      %1080 = sbr.rel (0) target = $region81
    $region80: #{tpu_custom_call.1} parent=1 // pred_region
      %1082 = dma.done [#allocation13], 128
    $region81: #{tpu_custom_call.1} parent=1 // pred_fallthru
      _
    %1083 = vsyncpa [#allocation3], 1
    %1084 = vsyncpa [#allocation6], 1
    %1085 = vsyncpa [#allocation9], 1
    %1086 = vsyncpa [#allocation4], 1
    %1087 = vsyncpa [#allocation13], 1

</llo_original>
